<compile_context>
chip_gen: v6e
topology: v6e:2x2x1
jax: 0.10.0
libtpu: 0.0.40
codegen_flags: <defaults>
</compile_context>

<pallas_src>
import functools

import jax
import jax.numpy as jnp
from jax.experimental import pallas as pl
from jax.experimental.pallas import tpu as pltpu


_EPS = 1e-12  # torch.nn.functional.normalize default eps


def _seqvlad_kernel(x_ref, w_ref, c_ref, o_ref, accm_ref, accs_ref, *,
                    p_valid, p_chunk, needs_mask, mxu_dtype, approx_recip):
    """Grid = (sequence n [parallel], P-chunk [arbitrary, reduction, innermost]).

    x_ref   : (1, C, Pc)  lane-dense chunk of the (b, C, P) tensor (channels
                          on sublanes, spatial on lanes), MXU dtype
    w_ref   : (K, C)      1x1 conv weight (MXU dtype, resident in VMEM)
    c_ref   : (K, C)      centroids (f32, resident)
    o_ref   : (1, K, D)   per-sequence VLAD (lane-dense, D = C)
    accm_ref: (K, D) f32  scratch: accumulates sum_p a[k,p] * xn[d,p]
    accs_ref: (K, 1) f32  scratch: accumulates sum_p a[k,p]
    """
    step = pl.program_id(1)

    @pl.when(step == 0)
    def _init():
        accm_ref[...] = jnp.zeros_like(accm_ref)
        accs_ref[...] = jnp.zeros_like(accs_ref)

    x = x_ref[0]                                                 # (C, Pc)

    # 1 / max(||x_p||, eps) per spatial location (over channels), all f32.
    ssq = jnp.sum(jnp.square(x.astype(jnp.float32)), axis=0, keepdims=True)
    inv = jax.lax.rsqrt(jnp.maximum(ssq, _EPS * _EPS))           # (1, Pc)

    # 1x1-conv logits on normalized descriptors WITHOUT materializing xn:
    #   (w @ x) * inv == w @ (x * inv).  Natural MXU orientation
    #   (contraction on lane axis of w / sublane axis of x).
    logits = jnp.dot(w_ref[...], x,
                     preferred_element_type=jnp.float32) * inv   # (K, Pc)

    # softmax over clusters (axis 0), f32.
    # TODO(synk): on v6e/v7x a bf16 exp would ~double EUP throughput; kept
    # f32 so the same kernel stays correct/fast on v5e (no bf16 VPU/EUP).
    m = jnp.max(logits, axis=0, keepdims=True)                   # (1, Pc)
    e = jnp.exp(logits - m)                                      # (K, Pc)
    a = e * pl.reciprocal(jnp.sum(e, axis=0, keepdims=True),
                          approx=approx_recip)                   # (K, Pc)

    if needs_mask:
        # zero-padded spatial positions must not contribute to accs/accm
        pos = step * p_chunk + jax.lax.broadcasted_iota(
            jnp.int32, (1, p_chunk), 1)
        a = jnp.where(pos < p_valid, a, 0.0)

    # ONE accumulator update per grid step.
    accs_ref[...] += jnp.sum(a, axis=1, keepdims=True)           # (K, 1)
    a_scaled = (a * inv).astype(mxu_dtype)                       # (K, Pc)
    # lane-lane contraction; Mosaic handles the transposed operand.  If the
    # bundle ever shows a per-step vxpose on the critical path, swap operands
    # to a (D, K) accumulator and transpose once in finalize.
    accm_ref[...] += jax.lax.dot_general(
        a_scaled, x, dimension_numbers=(((1,), (1,)), ((), ())),
        preferred_element_type=jnp.float32)                      # (K, D)

    @pl.when(step == pl.num_programs(1) - 1)
    def _finalize():
        cents = c_ref[...]                                       # (K, D) f32
        vlad = accm_ref[...] - accs_ref[...] * cents             # (K, D)
        # intra-normalization over D
        inv_intra = jax.lax.rsqrt(jnp.maximum(
            jnp.sum(vlad * vlad, axis=1, keepdims=True), _EPS * _EPS))
        vlad = vlad * inv_intra
        # global L2 normalization over the flattened (K*D) vector
        inv_glob = jax.lax.rsqrt(jnp.maximum(jnp.sum(vlad * vlad),
                                             _EPS * _EPS))
        o_ref[0] = (vlad * inv_glob).astype(o_ref.dtype)


def _pick_p_chunk(P, bytes_per_col, *, max_lanes=1024, max_tile_bytes=2 << 20):
    """Lane chunk (multiple of 128) for the spatial axis P.

    Conservative, generation-agnostic x-tile budget (<= 2 MiB, so <= 4 MiB
    double-buffered) stays far below v5e's 16 MiB scoped default and leaves
    ample headroom on v7x's 64 MiB physical VMEM, while using >= 512-1024
    lanes whenever P allows it so the MXU/VPU run lane-dense and the ~0.35us
    per-step overhead is amortized.

    Returns (p_chunk, p_padded, needs_mask).
    """
    if P <= 128:
        return P, P, False                      # single tiny chunk, no padding
    budget_lanes = max(128, (max_tile_bytes // bytes_per_col) // 128 * 128)
    p_round = ((P + 127) // 128) * 128
    pc = min(p_round, max_lanes, budget_lanes)
    p_pad = ((P + pc - 1) // pc) * pc
    return pc, p_pad, p_pad != P


def seqvlad_forward(x, conv_w, centroids, seq_length, *, use_bf16_mxu=True):
    """x: (b*seq_length, C, H, W) NCHW. conv_w/centroids: (K, C). -> (b, K*C)."""
    BS, C, H, W = x.shape
    assert BS % seq_length == 0
    b = BS // seq_length
    K, D = conv_w.shape
    assert D == C
    P = seq_length * H * W

    mxu_dtype = jnp.bfloat16 if use_bf16_mxu else jnp.float32

    # One-time rearrange '(b s) c h w -> b c (s h w)' (one HBM pass by XLA)
    # so the kernel's lane axis is the full, lane-dense spatial axis P.
    x3 = jnp.transpose(x.reshape(b, seq_length, C, H * W),
                       (0, 2, 1, 3)).reshape(b, C, P)
    if use_bf16_mxu:
        # NOTE: the L2 norm / logits are then computed from bf16-quantized
        # features (~1e-3 deviation after the double L2 normalization); use
        # use_bf16_mxu=False for tight f32 parity with the PyTorch path.
        x3 = x3.astype(jnp.bfloat16)            # halves x DMA bytes + tiles
    w = conv_w.astype(mxu_dtype)
    cents = centroids.astype(jnp.float32)

    p_chunk, p_pad, needs_mask = _pick_p_chunk(P, C * x3.dtype.itemsize)
    if p_pad != P:
        x3 = jnp.pad(x3, ((0, 0), (0, 0), (0, p_pad - P)))
    n_chunks = p_pad // p_chunk

    kernel = functools.partial(
        _seqvlad_kernel, p_valid=P, p_chunk=p_chunk, needs_mask=needs_mask,
        mxu_dtype=mxu_dtype, approx_recip=use_bf16_mxu)

    cost = pl.CostEstimate(
        flops=4 * b * P * K * C,                  # two MXU contractions
        transcendentals=b * P * (K + 2),          # exp + rsqrt + reciprocal
        bytes_accessed=(x3.size * x3.dtype.itemsize
                        + w.size * w.dtype.itemsize
                        + cents.size * cents.dtype.itemsize
                        + b * K * D * 4))

    # TODO(synk): if b == 1 on v7x (2 TensorCores), add a second parallel
    # split (halve the P reduction per core + tiny cross-core combine) so
    # both cores are used.
    out = pl.pallas_call(
        kernel,
        out_shape=jax.ShapeDtypeStruct((b, K, D), jnp.float32),
        grid_spec=pltpu.PrefetchScalarGridSpec(
            num_scalar_prefetch=0,
            grid=(b, n_chunks),       # (parallel batch, P-reduction innermost)
            in_specs=[
                pl.BlockSpec((1, C, p_chunk), lambda n, c: (n, 0, c)),
                pl.BlockSpec((K, C), lambda n, c: (0, 0)),  # resident weight
                pl.BlockSpec((K, C), lambda n, c: (0, 0)),  # resident centroids
            ],
            out_specs=pl.BlockSpec((1, K, D), lambda n, c: (n, 0, 0)),
            scratch_shapes=[
                pltpu.VMEM((K, D), jnp.float32),  # sum_p a * xn
                pltpu.VMEM((K, 1), jnp.float32),  # sum_p a
            ],
        ),
        compiler_params=pltpu.CompilerParams(
            dimension_semantics=("parallel", "arbitrary"),
            vmem_limit_bytes=40 * 1024 * 1024,    # safe on v5e/v6e/v7x
        ),
        cost_estimate=cost,
    )(x3, w, cents)
    return out.reshape(b, K * D)


def seqvlad_reference(x, conv_w, centroids, seq_length):
    """Pure-JAX reference mirroring the PyTorch forward (for validation)."""
    eps = 1e-12
    BS, C, H, W = x.shape
    b = BS // seq_length
    xr = x.reshape(b, seq_length, C, H * W)
    xr = jnp.transpose(xr, (0, 2, 1, 3)).reshape(b, C, seq_length * H * W)
    nrm = jnp.sqrt(jnp.sum(xr * xr, axis=1, keepdims=True))
    xn = xr / jnp.maximum(nrm, eps)
    logits = jnp.einsum("kd,ndp->nkp", conv_w, xn)
    a = jax.nn.softmax(logits, axis=1)                           # (N, K, P)
    vlad = (jnp.einsum("nkp,ndp->nkd", a, xn)
            - jnp.sum(a, axis=-1)[..., None] * centroids[None])
    vnrm = jnp.sqrt(jnp.sum(vlad * vlad, axis=-1, keepdims=True))
    vlad = vlad / jnp.maximum(vnrm, eps)
    flat = vlad.reshape(b, -1)
    g = jnp.sqrt(jnp.sum(flat * flat, axis=-1, keepdims=True))
    return flat / jnp.maximum(g, eps)


def _run_case(key, *, b, seq_length, C, K, h, w):
    kx, kw, kc = jax.random.split(key, 3)
    # input to the module: (b * seq_length, C, H, W) NCHW
    x = jax.random.normal(kx, (b * seq_length, C, h, w), dtype=jnp.float32)
    # synthetic parameters:
    #   conv: nn.Conv2d(C, K, 1, bias=False) -> weight (K, C) (1x1 squeezed)
    #   centroids: torch.rand(K, C) -> uniform [0, 1)
    bound = 1.0 / (C ** 0.5)
    conv_w = jax.random.uniform(kw, (K, C), jnp.float32, -bound, bound)
    centroids = jax.random.uniform(kc, (K, C), jnp.float32)

    ref = jax.block_until_ready(seqvlad_reference(x, conv_w, centroids,
                                                  seq_length))

    # f32-MXU path: tight check against the reference.
    out_f32 = jax.block_until_ready(
        seqvlad_forward(x, conv_w, centroids, seq_length, use_bf16_mxu=False))
    assert out_f32.shape == (b, K * C)
    err_f32 = float(jnp.max(jnp.abs(out_f32 - ref)))
    assert err_f32 < 5e-4, err_f32

    # bf16-MXU path (default / fast): outputs are doubly L2-normalized, so
    # bf16 operands + approx reciprocal perturb results only at ~1e-4 level.
    out_bf16 = jax.block_until_ready(
        seqvlad_forward(x, conv_w, centroids, seq_length, use_bf16_mxu=True))
    assert out_bf16.shape == (b, K * C)
    err_bf16 = float(jnp.max(jnp.abs(out_bf16 - ref)))
    assert err_bf16 < 4e-3, err_bf16


if __name__ == "__main__":
    k1, k2 = jax.random.split(jax.random.PRNGKey(0))
    # lane-dense case: P = 8*16*16 = 2048 -> two 1024-lane reduction chunks
    _run_case(k1, b=2, seq_length=8, C=128, K=64, h=16, w=16)
    # ragged case: P = 3*7*7 = 147 -> one 256-lane chunk with lane masking
    _run_case(k2, b=2, seq_length=3, C=128, K=64, h=7, w=7)
    print("KERNEL_OK")
</pallas_src>

<mosaic_0001>
module attributes {stable_mosaic.version = 11 : i64} {
  func.func @_seqvlad_kernel(%arg0: i32, %arg1: i32, %arg2: memref<1x128x1024xf32, #tpu.memory_space<vmem>>, %arg3: memref<64x128xf32, #tpu.memory_space<vmem>>, %arg4: memref<64x128xf32, #tpu.memory_space<vmem>>, %arg5: memref<1x64x128xf32, #tpu.memory_space<vmem>>, %arg6: memref<64x128xf32, #tpu.memory_space<vmem>>, %arg7: memref<64x1xf32, #tpu.memory_space<vmem>>) attributes {dimension_semantics = [#tpu.dimension_semantics<parallel>, #tpu.dimension_semantics<arbitrary>], iteration_bounds = array<i64: 2, 2>, scalar_prefetch = 0 : i64, scratch_operands = 2 : i64, tpu.core_type = #tpu.core_type<tc>, window_params = [{transform_indices = @transform_0, window_bounds = array<i64: 1, 128, 1024>}, {pipeline_mode = #tpu.pipeline_mode<synchronous>, transform_indices = @transform_1, window_bounds = array<i64: 64, 128>}, {pipeline_mode = #tpu.pipeline_mode<synchronous>, transform_indices = @transform_2, window_bounds = array<i64: 64, 128>}, {transform_indices = @transform_3, window_bounds = array<i64: 1, 64, 128>}]} {
    %c0_i32 = arith.constant 0 : i32
    %0 = arith.cmpi eq, %arg1, %c0_i32 : i32
    %1 = arith.extui %0 : i1 to i32
    %c0_i32_0 = arith.constant 0 : i32
    %2 = arith.cmpi ne, %1, %c0_i32_0 : i32
    scf.if %2 {
      %cst_20 = arith.constant 0.000000e+00 : f32
      %39 = vector.broadcast %cst_20 : f32 to vector<64x128xf32>
      %c0_21 = arith.constant 0 : index
      %c0_22 = arith.constant 0 : index
      %40 = vector.load %arg6[%c0_21, %c0_22] : memref<64x128xf32, #tpu.memory_space<vmem>>, vector<64x128xf32>
      tpu.vector_store %arg6[%c0_21, %c0_22], %39 {strides = array<i32>} : memref<64x128xf32, #tpu.memory_space<vmem>>, vector<64x128xf32>,
      %cst_23 = arith.constant 0.000000e+00 : f32
      %41 = vector.broadcast %cst_23 : f32 to vector<64x1xf32>
      %c0_24 = arith.constant 0 : index
      %c0_25 = arith.constant 0 : index
      %42 = vector.load %arg7[%c0_24, %c0_25] : memref<64x1xf32, #tpu.memory_space<vmem>>, vector<64x1xf32>
      tpu.vector_store %arg7[%c0_24, %c0_25], %41 {strides = array<i32>} : memref<64x1xf32, #tpu.memory_space<vmem>>, vector<64x1xf32>,
    } else {
    }
    %c0 = arith.constant 0 : index
    %c0_1 = arith.constant 0 : index
    %c0_2 = arith.constant 0 : index
    %3 = vector.load %arg2[%c0, %c0_1, %c0_2] : memref<1x128x1024xf32, #tpu.memory_space<vmem>>, vector<1x128x1024xf32>
    %4 = vector.shape_cast %3 : vector<1x128x1024xf32> to vector<128x1024xf32>
    %5 = arith.mulf %4, %4 : vector<128x1024xf32>
    %cst = arith.constant dense<0.000000e+00> : vector<1024xf32>
    %6 = vector.multi_reduction <add>, %5, %cst [0] : vector<128x1024xf32> to vector<1024xf32>
    %7 = vector.shape_cast %6 : vector<1024xf32> to vector<1x1024xf32>
    %cst_3 = arith.constant 1.000000e-24 : f32
    %8 = vector.broadcast %cst_3 : f32 to vector<1x1024xf32>
    %9 = arith.maximumf %7, %8 : vector<1x1024xf32>
    %10 = math.rsqrt %9 : vector<1x1024xf32>
    %c0_4 = arith.constant 0 : index
    %c0_5 = arith.constant 0 : index
    %11 = vector.load %arg3[%c0_4, %c0_5] : memref<64x128xf32, #tpu.memory_space<vmem>>, vector<64x128xf32>
    %cst_6 = arith.constant dense<0.000000e+00> : vector<64x1024xf32>
    %12 = tpu.matmul %11, %4, %cst_6 {dimension_numbers = #tpu.dot_dimension_numbers<[1], [0], [0], [1], [0, 0, 1, 1], [], []>} : vector<64x128xf32>, vector<128x1024xf32>, vector<64x1024xf32> -> vector<64x1024xf32>
    %13 = vector.broadcast %10 : vector<1x1024xf32> to vector<64x1024xf32>
    %14 = arith.mulf %12, %13 : vector<64x1024xf32>
    %cst_7 = arith.constant dense<0xFF800000> : vector<1024xf32>
    %15 = vector.multi_reduction <maximumf>, %14, %cst_7 [0] : vector<64x1024xf32> to vector<1024xf32>
    %16 = vector.shape_cast %15 : vector<1024xf32> to vector<1x1024xf32>
    %17 = vector.broadcast %16 : vector<1x1024xf32> to vector<64x1024xf32>
    %18 = arith.subf %14, %17 : vector<64x1024xf32>
    %19 = math.exp %18 : vector<64x1024xf32>
    %cst_8 = arith.constant dense<0.000000e+00> : vector<1024xf32>
    %20 = vector.multi_reduction <add>, %19, %cst_8 [0] : vector<64x1024xf32> to vector<1024xf32>
    %21 = vector.shape_cast %20 : vector<1024xf32> to vector<1x1024xf32>
    %22 = tpu.reciprocal %21 : vector<1x1024xf32> -> vector<1x1024xf32>
    %23 = vector.broadcast %22 : vector<1x1024xf32> to vector<64x1024xf32>
    %24 = arith.mulf %19, %23 : vector<64x1024xf32>
    %c0_9 = arith.constant 0 : index
    %c0_10 = arith.constant 0 : index
    %25 = vector.load %arg7[%c0_9, %c0_10] : memref<64x1xf32, #tpu.memory_space<vmem>>, vector<64x1xf32>
    %cst_11 = arith.constant dense<0.000000e+00> : vector<64xf32>
    %26 = vector.multi_reduction <add>, %24, %cst_11 [1] : vector<64x1024xf32> to vector<64xf32>
    %27 = vector.shape_cast %26 : vector<64xf32> to vector<64x1xf32>
    %28 = arith.addf %25, %27 : vector<64x1xf32>
    %c0_12 = arith.constant 0 : index
    %c0_13 = arith.constant 0 : index
    %29 = vector.load %arg7[%c0_12, %c0_13] : memref<64x1xf32, #tpu.memory_space<vmem>>, vector<64x1xf32>
    tpu.vector_store %arg7[%c0_12, %c0_13], %28 {strides = array<i32>} : memref<64x1xf32, #tpu.memory_space<vmem>>, vector<64x1xf32>,
    %30 = vector.broadcast %10 : vector<1x1024xf32> to vector<64x1024xf32>
    %31 = arith.mulf %24, %30 : vector<64x1024xf32>
    %c0_14 = arith.constant 0 : index
    %c0_15 = arith.constant 0 : index
    %32 = vector.load %arg6[%c0_14, %c0_15] : memref<64x128xf32, #tpu.memory_space<vmem>>, vector<64x128xf32>
    %cst_16 = arith.constant dense<0.000000e+00> : vector<64x128xf32>
    %33 = tpu.matmul %31, %4, %cst_16 {dimension_numbers = #tpu.dot_dimension_numbers<[1], [1], [0], [0], [0, 0, 1, 0], [], []>} : vector<64x1024xf32>, vector<128x1024xf32>, vector<64x128xf32> -> vector<64x128xf32>
    %34 = arith.addf %32, %33 : vector<64x128xf32>
    %c0_17 = arith.constant 0 : index
    %c0_18 = arith.constant 0 : index
    %35 = vector.load %arg6[%c0_17, %c0_18] : memref<64x128xf32, #tpu.memory_space<vmem>>, vector<64x128xf32>
    tpu.vector_store %arg6[%c0_17, %c0_18], %34 {strides = array<i32>} : memref<64x128xf32, #tpu.memory_space<vmem>>, vector<64x128xf32>,
    %c1_i32 = arith.constant 1 : i32
    %36 = arith.cmpi eq, %arg1, %c1_i32 : i32
    %37 = arith.extui %36 : i1 to i32
    %c0_i32_19 = arith.constant 0 : i32
    %38 = arith.cmpi ne, %37, %c0_i32_19 : i32
    scf.if %38 {
      %c0_20 = arith.constant 0 : index
      %c0_21 = arith.constant 0 : index
      %39 = vector.load %arg4[%c0_20, %c0_21] : memref<64x128xf32, #tpu.memory_space<vmem>>, vector<64x128xf32>
      %c0_22 = arith.constant 0 : index
      %c0_23 = arith.constant 0 : index
      %40 = vector.load %arg6[%c0_22, %c0_23] : memref<64x128xf32, #tpu.memory_space<vmem>>, vector<64x128xf32>
      %c0_24 = arith.constant 0 : index
      %c0_25 = arith.constant 0 : index
      %41 = vector.load %arg7[%c0_24, %c0_25] : memref<64x1xf32, #tpu.memory_space<vmem>>, vector<64x1xf32>
      %42 = vector.broadcast %41 : vector<64x1xf32> to vector<64x128xf32>
      %43 = arith.mulf %42, %39 : vector<64x128xf32>
      %44 = arith.subf %40, %43 : vector<64x128xf32>
      %45 = arith.mulf %44, %44 : vector<64x128xf32>
      %cst_26 = arith.constant dense<0.000000e+00> : vector<64xf32>
      %46 = vector.multi_reduction <add>, %45, %cst_26 [1] : vector<64x128xf32> to vector<64xf32>
      %47 = vector.shape_cast %46 : vector<64xf32> to vector<64x1xf32>
      %cst_27 = arith.constant 1.000000e-24 : f32
      %48 = vector.broadcast %cst_27 : f32 to vector<64x1xf32>
      %49 = arith.maximumf %47, %48 : vector<64x1xf32>
      %50 = math.rsqrt %49 : vector<64x1xf32>
      %51 = vector.broadcast %50 : vector<64x1xf32> to vector<64x128xf32>
      %52 = arith.mulf %44, %51 : vector<64x128xf32>
      %53 = arith.mulf %52, %52 : vector<64x128xf32>
      %54 = vector.shape_cast %53 : vector<64x128xf32> to vector<1x64x128xf32>
      %cst_28 = arith.constant dense<0.000000e+00> : vector<1xf32>
      %55 = vector.multi_reduction <add>, %54, %cst_28 [1, 2] : vector<1x64x128xf32> to vector<1xf32>
      %56 = vector.shape_cast %55 : vector<1xf32> to vector<1x1x1xf32>
      %57 = vector.extract %56[0, 0, 0] : f32 from vector<1x1x1xf32>
      %cst_29 = arith.constant 1.000000e-24 : f32
      %58 = arith.maximumf %57, %cst_29 : f32
      %59 = math.rsqrt %58 : f32
      %60 = vector.broadcast %59 : f32 to vector<64x128xf32>
      %61 = arith.mulf %52, %60 : vector<64x128xf32>
      %c0_30 = arith.constant 0 : index
      %c0_31 = arith.constant 0 : index
      %c0_32 = arith.constant 0 : index
      %62 = vector.load %arg5[%c0_30, %c0_31, %c0_32] : memref<1x64x128xf32, #tpu.memory_space<vmem>>, vector<1x64x128xf32>
      %63 = vector.shape_cast %62 : vector<1x64x128xf32> to vector<64x128xf32>
      %64 = vector.shape_cast %61 : vector<64x128xf32> to vector<1x64x128xf32>
      tpu.vector_store %arg5[%c0_30, %c0_31, %c0_32], %64 {strides = array<i32>} : memref<1x64x128xf32, #tpu.memory_space<vmem>>, vector<1x64x128xf32>,
    } else {
    }
    return
  }
  func.func @transform_0(%arg0: i32, %arg1: i32) -> (i32, i32, i32) {
    %c0_i32 = arith.constant 0 : i32
    %c0_i32_0 = arith.constant 0 : i32
    return %arg0, %c0_i32, %arg1 : i32, i32, i32
  }
  func.func @transform_1(%arg0: i32, %arg1: i32) -> (i32, i32) {
    %c0_i32 = arith.constant 0 : i32
    %c0_i32_0 = arith.constant 0 : i32
    %c0_i32_1 = arith.constant 0 : i32
    return %c0_i32, %c0_i32_0 : i32, i32
  }
  func.func @transform_2(%arg0: i32, %arg1: i32) -> (i32, i32) {
    %c0_i32 = arith.constant 0 : i32
    %c0_i32_0 = arith.constant 0 : i32
    %c0_i32_1 = arith.constant 0 : i32
    return %c0_i32, %c0_i32_0 : i32, i32
  }
  func.func @transform_3(%arg0: i32, %arg1: i32) -> (i32, i32, i32) {
    %c0_i32 = arith.constant 0 : i32
    %c0_i32_0 = arith.constant 0 : i32
    %c0_i32_1 = arith.constant 0 : i32
    return %arg0, %c0_i32, %c0_i32_0 : i32, i32, i32
  }
}

</mosaic_0001>

<llo_original>
// kernel: tpu_custom_call.1
$region0: #{tpu_custom_call.1}
  #allocation0 [shape = 'u32[]', space=smem, size = 0x4, offset = 0x4, fixed_abs, tag = 'smem constant byte address 0x4 - core index']
  #allocation1 [shape = 'u32[144,128]{1,0:T(1,128)}', space=vmem, size = 0x12000, scoped, tag = 'internal scratch']
  #allocation2 [shape = 'f32[64,128]{1,0:T(8,128)}', space=vmem, size = 0x8000, scoped, tag = 'scratch operand']
  #allocation3 [shape = 'f32[64,1]{1,0:T(8,128)}', space=vmem, size = 0x8000, scoped, tag = 'scratch operand']
  %s0 = inlined_call_operand.hbm [shape: f32[2,128,2048], index: 0, kind: input, shape index: {}]
  %s1 = inlined_call_operand.hbm [shape: f32[64,128], index: 1, kind: input, shape index: {}]
  %s2 = inlined_call_operand.hbm [shape: f32[64,128], index: 2, kind: input, shape index: {}]
  %s3 = inlined_call_operand.hbm [shape: f32[2,64,128], index: 3, kind: output, shape index: {}]
  %s4 = sld [smem:[#allocation0]]
  $region65: #{tpu_custom_call.1} parent=0
    _
  %s6 = ssub.s32 1, %s4
  %s7 = scalar_select 0, %s6, %s4
  $region1: #{tpu_custom_call.1} parent=0
    #allocation4 [shape = 'u8[1048576]{0}', space=vmem, size = 0x100000, scoped, tag = 'input window, operand 0']
    #allocation5 [shape = 's32[2]{0}', space=sflag, size = 0x8, scoped, tag = 'scoped memory for tpu_custom_call.1']
    #allocation6 [shape = 's32[2]{0}', space=sflag, size = 0x8, scoped, tag = 'scoped memory for tpu_custom_call.1']
    #allocation7 [shape = 'u8[32768]{0}', space=vmem, size = 0x8000, scoped, tag = 'input window, operand 1, single buffered']
    #allocation8 [shape = 's32[1]{0}', space=sflag, size = 0x4, scoped, tag = 'scoped memory for tpu_custom_call.1']
    #allocation9 [shape = 'u8[32768]{0}', space=vmem, size = 0x8000, scoped, tag = 'input window, operand 2, single buffered']
    #allocation10 [shape = 'u8[65536]{0}', space=vmem, size = 0x10000, scoped, tag = 'output window, operand 0']
    %8 = vsyncpa [#allocation5], 0
    %s9 = scalar_lea.sflag [#allocation5], 1
    %10 = vsyncpa %s9, 0
    %11 = vsyncpa [#allocation8], 0
    %12 = vsyncpa [#allocation6], 0
    %s13 = scalar_lea.sflag [#allocation6], 1
    %14 = vsyncpa %s13, 0
    loop: start=0, step=1, limit=6
    $region2: #{tpu_custom_call.1} parent=1 // loop_pre_header
      _
    $region3: #{tpu_custom_call.1} parent=1 // loop_header
      %s16 = sphi 0, %s20
      %p17 = scmp.ge.s32.totalorder %s16, 6
      %s23 = sphi 0, %s35
      %s24 = sphi 0, %s31
      %s25 = sphi 0, %s23
      %s26 = sphi 0, %s24
      %s27 = sphi 0, %s25
      %s28 = sphi 0, %s26
      %s40 = sphi 0, %s42
      %s43 = sphi 0, %s40
      %s44 = sphi 0, %s43
      %s60 = sphi 0, %s44
      %s64 = sphi 0, %s64
      %s66 = sphi 0, %s64
      %s67 = sphi 0, %s66
      %s81 = sphi 0, %s67
      %s85 = sphi 0, %s85
      %s87 = sphi 0, %s85
      %s88 = sphi 0, %s87
      %s102 = sphi 0, %s88
      %s108 = sphi 0, %s110
      %s111 = sphi 0, %s108
      %s112 = sphi 0, %s111
      %s128 = sphi 0, %s112
    $region4: #{tpu_custom_call.1} parent=1 // loop_header_branch
      %19 = sbr.rel (%p17) target = $region8
    $region5: #{tpu_custom_call.1} parent=1 // loop_body
      %s21 = ssub.s32 %s16, 1
      %s22 = ssub.s32 %s16, 2
      %s29 = sadd.s32 1, %s24
      %p30 = scmp.ge.s32.totalorder %s29, 2
      %s31 = scalar_select %p30, 0, %s29
      %s32 = sadd.s32 1, %s23
      %s33 = scalar_select %p30, %s32, %s23
      %p34 = scmp.ge.s32.totalorder %s33, 2
      %s35 = scalar_select %p34, 0, %s33
      %s36 = ssub.s32 %s23, %s35
      %s37 = ssub.s32 %s24, %s31
      %s38 = sor.u32 %s36, %s37
      %p39 = scmp.eq.s32.totalorder %s38, 0
      %s41 = sadd.s32 %s40, 1
      %s42 = scalar_select %p39, %s40, %s41
      %p45 = pneg %p39
      %p46 = scmp.eq.s32.totalorder %s16, 3
      %p47 = por %p45, %p46
      %p48 = scmp.ne.s32.totalorder %s40, %s43
      %p49 = scmp.eq.s32.totalorder %s16, 0
      %p50 = por %p48, %p49
      %p51 = scmp.ne.s32.totalorder %s40, %s43
      %p52 = scmp.eq.s32.totalorder %s21, 3
      %p53 = por %p51, %p52
      %p54 = scmp.ne.s32.totalorder %s43, %s44
      %p55 = scmp.eq.s32.totalorder %s21, 0
      %p56 = por %p54, %p55
      %p57 = scmp.ne.s32.totalorder %s43, %s44
      %p58 = scmp.eq.s32.totalorder %s22, 3
      %p59 = por %p57, %p58
      %p61 = scmp.ne.s32.totalorder %s44, %s60
      %p62 = scmp.eq.s32.totalorder %s22, 0
      %p63 = por %p61, %p62
      %s65 = sadd.s32 %s64, 1
      %p68 = scmp.eq.s32.totalorder %s16, 3
      %p69 = scmp.ne.s32.totalorder %s64, %s66
      %p70 = scmp.eq.s32.totalorder %s16, 0
      %p71 = por %p69, %p70
      %p72 = scmp.ne.s32.totalorder %s64, %s66
      %p73 = scmp.eq.s32.totalorder %s21, 3
      %p74 = por %p72, %p73
      %p75 = scmp.ne.s32.totalorder %s66, %s67
      %p76 = scmp.eq.s32.totalorder %s21, 0
      %p77 = por %p75, %p76
      %p78 = scmp.ne.s32.totalorder %s66, %s67
      %p79 = scmp.eq.s32.totalorder %s22, 3
      %p80 = por %p78, %p79
      %p82 = scmp.ne.s32.totalorder %s67, %s81
      %p83 = scmp.eq.s32.totalorder %s22, 0
      %p84 = por %p82, %p83
      %s86 = sadd.s32 %s85, 1
      %p89 = scmp.eq.s32.totalorder %s16, 3
      %p90 = scmp.ne.s32.totalorder %s85, %s87
      %p91 = scmp.eq.s32.totalorder %s16, 0
      %p92 = por %p90, %p91
      %p93 = scmp.ne.s32.totalorder %s85, %s87
      %p94 = scmp.eq.s32.totalorder %s21, 3
      %p95 = por %p93, %p94
      %p96 = scmp.ne.s32.totalorder %s87, %s88
      %p97 = scmp.eq.s32.totalorder %s21, 0
      %p98 = por %p96, %p97
      %p99 = scmp.ne.s32.totalorder %s87, %s88
      %p100 = scmp.eq.s32.totalorder %s22, 3
      %p101 = por %p99, %p100
      %p103 = scmp.ne.s32.totalorder %s88, %s102
      %p104 = scmp.eq.s32.totalorder %s22, 0
      %p105 = por %p103, %p104
      %s106 = ssub.s32 %s23, %s35
      %p107 = scmp.eq.s32.totalorder %s106, 0
      %s109 = sadd.s32 %s108, 1
      %s110 = scalar_select %p107, %s108, %s109
      %p113 = pneg %p107
      %p114 = scmp.eq.s32.totalorder %s16, 3
      %p115 = por %p113, %p114
      %p116 = scmp.ne.s32.totalorder %s108, %s111
      %p117 = scmp.eq.s32.totalorder %s16, 0
      %p118 = por %p116, %p117
      %p119 = scmp.ne.s32.totalorder %s108, %s111
      %p120 = scmp.eq.s32.totalorder %s21, 3
      %p121 = por %p119, %p120
      %p122 = scmp.ne.s32.totalorder %s111, %s112
      %p123 = scmp.eq.s32.totalorder %s21, 0
      %p124 = por %p122, %p123
      %p125 = scmp.ne.s32.totalorder %s111, %s112
      %p126 = scmp.eq.s32.totalorder %s22, 3
      %p127 = por %p125, %p126
      %p129 = scmp.ne.s32.totalorder %s112, %s128
      %p130 = scmp.eq.s32.totalorder %s22, 0
      %p131 = por %p129, %p130
      %p132 = scmp.le.s32.totalorder 1, %s16
      %p133 = scmp.lt.s32.totalorder %s16, 5
      %p134 = pnand %p132, %p133
      %p135 = pneg %p134
      // Predicated region
      $region9: #{tpu_custom_call.1} parent=5 // pred_check
        _
      $region10: #{tpu_custom_call.1} parent=5 // pred_check_branch
        %137 = sbr.rel (%p134) target = $region12
      $region11: #{tpu_custom_call.1} parent=5 // pred_region
        %s138 = ssub.s32 %s16, 1
        // Predicated region
        $region13: #{tpu_custom_call.1} parent=11 // pred_check
          %p139 = pneg %p77
        $region14: #{tpu_custom_call.1} parent=11 // pred_check_branch
          %141 = sbr.rel (%p139) target = $region16
        $region15: #{tpu_custom_call.1} parent=11 // pred_region
          %s143 = ssub.s32 1024, 1024
          %144 = vsyncadd [#allocation8], %s143
          %s145 = sshll.u32 [#allocation7], 4
          %s146 = int_to_ptr.vmem [resolvable:$true] %s145
          %151 = dma.hbm_to_vmem [thread:$0]  %s1, 1024, %s146, [#allocation8], 128, 128, 8
        $region16: #{tpu_custom_call.1} parent=11 // pred_fallthru
          _
        // Predicated region
        $region17: #{tpu_custom_call.1} parent=11 // pred_check
          %p152 = pneg %p98
        $region18: #{tpu_custom_call.1} parent=11 // pred_check_branch
          %154 = sbr.rel (%p152) target = $region20
        $region19: #{tpu_custom_call.1} parent=11 // pred_region
          %s156 = ssub.s32 1024, 1024
          %157 = vsyncadd [#allocation8], %s156
          %s158 = sshll.u32 [#allocation9], 4
          %s159 = int_to_ptr.vmem [resolvable:$true] %s158
          %164 = dma.hbm_to_vmem [thread:$0]  %s2, 1024, %s159, [#allocation8], 128, 128, 8
        $region20: #{tpu_custom_call.1} parent=11 // pred_fallthru
          _
      $region12: #{tpu_custom_call.1} parent=5 // pred_fallthru
        _
      %p165 = scmp.lt.s32.totalorder %s16, 4
      // Predicated region
      $region21: #{tpu_custom_call.1} parent=5 // pred_check
        %p166 = pneg %p165
      $region22: #{tpu_custom_call.1} parent=5 // pred_check_branch
        %168 = sbr.rel (%p166) target = $region24
      $region23: #{tpu_custom_call.1} parent=5 // pred_region
        // Predicated region
        $region25: #{tpu_custom_call.1} parent=23 // pred_check
          %p169 = pneg %p50
        $region26: #{tpu_custom_call.1} parent=23 // pred_check_branch
          %171 = sbr.rel (%p169) target = $region28
        $region27: #{tpu_custom_call.1} parent=23 // pred_region
          %s172 = sand.u32 %s40, 1
          %s173 = scalar_lea.sflag [#allocation5], %s172
          %s174 = sand.u32 %s40, 1
          %s175 = smul.addr %s174, 1024
          %s176 = scalar_lea.vmem [#allocation4], %s175
          %s177 = smul.u32 8, %s24
          %s179 = ssub.s32 16384, 16384
          %180 = vsyncadd %s173, %s179
          %s181 = smul.addr %s23, 256
          %s182 = sadd.s32 %s177, %s181
          %s183 = smul.addr %s182, 128
          %s184 = scalar_lea.hbm %s0, %s183
          %s185 = sshll.u32 %s176, 4
          %s186 = int_to_ptr.vmem [resolvable:$true] %s185
          %191 = dma.hbm_to_vmem [thread:$0]  %s184, 16384, %s186, %s173, 2048, 1024, 64
        $region28: #{tpu_custom_call.1} parent=23 // pred_fallthru
          _
      $region24: #{tpu_custom_call.1} parent=5 // pred_fallthru
        _
      %p192 = scmp.le.s32.totalorder 1, %s16
      %p193 = scmp.lt.s32.totalorder %s16, 5
      %p194 = pnand %p192, %p193
      %p195 = pneg %p194
      // Predicated region
      $region29: #{tpu_custom_call.1} parent=5 // pred_check
        _
      $region30: #{tpu_custom_call.1} parent=5 // pred_check_branch
        %197 = sbr.rel (%p194) target = $region32
      $region31: #{tpu_custom_call.1} parent=5 // pred_region
        %s198 = ssub.s32 %s16, 1
        %s199 = sand.u32 %s43, 1
        %s200 = scalar_lea.sflag [#allocation5], %s199
        %s201 = sand.u32 %s43, 1
        %s202 = smul.addr %s201, 1024
        %s203 = scalar_lea.vmem [#allocation4], %s202
        // Predicated region
        $region33: #{tpu_custom_call.1} parent=31 // pred_check
          %p204 = pneg %p56
        $region34: #{tpu_custom_call.1} parent=31 // pred_check_branch
          %206 = sbr.rel (%p204) target = $region36
        $region35: #{tpu_custom_call.1} parent=31 // pred_region
          %207 = dma.done %s200, 16384
        $region36: #{tpu_custom_call.1} parent=31 // pred_fallthru
          _
        // Predicated region
        $region37: #{tpu_custom_call.1} parent=31 // pred_check
          %p208 = pneg %p77
        $region38: #{tpu_custom_call.1} parent=31 // pred_check_branch
          %210 = sbr.rel (%p208) target = $region40
        $region39: #{tpu_custom_call.1} parent=31 // pred_region
          %211 = dma.done [#allocation8], 1024
        $region40: #{tpu_custom_call.1} parent=31 // pred_fallthru
          _
        // Predicated region
        $region41: #{tpu_custom_call.1} parent=31 // pred_check
          %p212 = pneg %p98
        $region42: #{tpu_custom_call.1} parent=31 // pred_check_branch
          %214 = sbr.rel (%p212) target = $region44
        $region43: #{tpu_custom_call.1} parent=31 // pred_region
          %215 = dma.done [#allocation8], 1024
        $region44: #{tpu_custom_call.1} parent=31 // pred_fallthru
          _
        %s216 = sand.u32 %s43, 1
        %s217 = scalar_lea.sflag [#allocation5], %s216
        %s218 = sand.u32 %s43, 1
        %s219 = smul.addr %s218, 1024
        %s220 = scalar_lea.vmem [#allocation4], %s219
        %p221 = pneg %p56
        %p222 = pneg %p53
        %p223 = pneg %p77
        %p224 = pneg %p74
        %p225 = pneg %p98
        %p226 = pneg %p95
        %p227 = pneg %p124
        %p228 = pneg %p121
        %s229 = sand.u32 %s111, 1
        %s230 = scalar_lea.sflag [#allocation6], %s229
        %s231 = sand.u32 %s111, 1
        %s232 = smul.addr %s231, 64
        %s233 = scalar_lea.vmem [#allocation10], %s232
        %s234 = smul.u32 8, %s26
        %p235 = scmp.eq.s32.totalorder %s26, 0
        // Predicated region
        $region45: #{tpu_custom_call.1} parent=31 // pred_check
          %p236 = pneg %p235
        $region46: #{tpu_custom_call.1} parent=31 // pred_check_branch
          %238 = sbr.rel (%p236) target = $region48
        $region47: #{tpu_custom_call.1} parent=31 // pred_region
          %239 = vst [vmem:[#allocation2] sm:$0xff] 0.0
          %240 = vst [vmem:[#allocation2 + $0x8] sm:$0xff] 0.0
          %241 = vst [vmem:[#allocation2 + $0x10] sm:$0xff] 0.0
          %242 = vst [vmem:[#allocation2 + $0x18] sm:$0xff] 0.0
          %243 = vst [vmem:[#allocation2 + $0x20] sm:$0xff] 0.0
          %244 = vst [vmem:[#allocation2 + $0x28] sm:$0xff] 0.0
          %245 = vst [vmem:[#allocation2 + $0x30] sm:$0xff] 0.0
          %246 = vst [vmem:[#allocation2 + $0x38] sm:$0xff] 0.0
          %vm247 = vcmask 7168
          %248 = vst.msk [vmem:[#allocation3] sm:$0xff] %vm247, 0.0
          %249 = vst.msk [vmem:[#allocation3 + $0x8] sm:$0xff] %vm247, 0.0
          %250 = vst.msk [vmem:[#allocation3 + $0x10] sm:$0xff] %vm247, 0.0
          %251 = vst.msk [vmem:[#allocation3 + $0x18] sm:$0xff] %vm247, 0.0
          %252 = vst.msk [vmem:[#allocation3 + $0x20] sm:$0xff] %vm247, 0.0
          %253 = vst.msk [vmem:[#allocation3 + $0x28] sm:$0xff] %vm247, 0.0
          %254 = vst.msk [vmem:[#allocation3 + $0x30] sm:$0xff] %vm247, 0.0
          %255 = vst.msk [vmem:[#allocation3 + $0x38] sm:$0xff] %vm247, 0.0
        $region48: #{tpu_custom_call.1} parent=31 // pred_fallthru
          _
        %v256 = vld [vmem:[%s203] sm:$0xff]
        %v257 = vld [vmem:[%s203 + $0x8] sm:$0xff]
        %v258 = vld [vmem:[%s203 + $0x10] sm:$0xff]
        %v259 = vld [vmem:[%s203 + $0x18] sm:$0xff]
        %v260 = vld [vmem:[%s203 + $0x20] sm:$0xff]
        %v261 = vld [vmem:[%s203 + $0x28] sm:$0xff]
        %v262 = vld [vmem:[%s203 + $0x30] sm:$0xff]
        %v263 = vld [vmem:[%s203 + $0x38] sm:$0xff]
        %v264 = vld [vmem:[%s203 + $0x40] sm:$0xff]
        %v265 = vld [vmem:[%s203 + $0x48] sm:$0xff]
        %v266 = vld [vmem:[%s203 + $0x50] sm:$0xff]
        %v267 = vld [vmem:[%s203 + $0x58] sm:$0xff]
        %v268 = vld [vmem:[%s203 + $0x60] sm:$0xff]
        %v269 = vld [vmem:[%s203 + $0x68] sm:$0xff]
        %v270 = vld [vmem:[%s203 + $0x70] sm:$0xff]
        %v271 = vld [vmem:[%s203 + $0x78] sm:$0xff]
        %v272 = vld [vmem:[%s203 + $0x80] sm:$0xff]
        %v273 = vld [vmem:[%s203 + $0x88] sm:$0xff]
        %v274 = vld [vmem:[%s203 + $0x90] sm:$0xff]
        %v275 = vld [vmem:[%s203 + $0x98] sm:$0xff]
        %v276 = vld [vmem:[%s203 + $0xa0] sm:$0xff]
        %v277 = vld [vmem:[%s203 + $0xa8] sm:$0xff]
        %v278 = vld [vmem:[%s203 + $0xb0] sm:$0xff]
        %v279 = vld [vmem:[%s203 + $0xb8] sm:$0xff]
        %v280 = vld [vmem:[%s203 + $0xc0] sm:$0xff]
        %v281 = vld [vmem:[%s203 + $0xc8] sm:$0xff]
        %v282 = vld [vmem:[%s203 + $0xd0] sm:$0xff]
        %v283 = vld [vmem:[%s203 + $0xd8] sm:$0xff]
        %v284 = vld [vmem:[%s203 + $0xe0] sm:$0xff]
        %v285 = vld [vmem:[%s203 + $0xe8] sm:$0xff]
        %v286 = vld [vmem:[%s203 + $0xf0] sm:$0xff]
        %v287 = vld [vmem:[%s203 + $0xf8] sm:$0xff]
        %v288 = vld [vmem:[%s203 + $0x100] sm:$0xff]
        %v289 = vld [vmem:[%s203 + $0x108] sm:$0xff]
        %v290 = vld [vmem:[%s203 + $0x110] sm:$0xff]
        %v291 = vld [vmem:[%s203 + $0x118] sm:$0xff]
        %v292 = vld [vmem:[%s203 + $0x120] sm:$0xff]
        %v293 = vld [vmem:[%s203 + $0x128] sm:$0xff]
        %v294 = vld [vmem:[%s203 + $0x130] sm:$0xff]
        %v295 = vld [vmem:[%s203 + $0x138] sm:$0xff]
        %v296 = vld [vmem:[%s203 + $0x140] sm:$0xff]
        %v297 = vld [vmem:[%s203 + $0x148] sm:$0xff]
        %v298 = vld [vmem:[%s203 + $0x150] sm:$0xff]
        %v299 = vld [vmem:[%s203 + $0x158] sm:$0xff]
        %v300 = vld [vmem:[%s203 + $0x160] sm:$0xff]
        %v301 = vld [vmem:[%s203 + $0x168] sm:$0xff]
        %v302 = vld [vmem:[%s203 + $0x170] sm:$0xff]
        %v303 = vld [vmem:[%s203 + $0x178] sm:$0xff]
        %v304 = vld [vmem:[%s203 + $0x180] sm:$0xff]
        %v305 = vld [vmem:[%s203 + $0x188] sm:$0xff]
        %v306 = vld [vmem:[%s203 + $0x190] sm:$0xff]
        %v307 = vld [vmem:[%s203 + $0x198] sm:$0xff]
        %v308 = vld [vmem:[%s203 + $0x1a0] sm:$0xff]
        %v309 = vld [vmem:[%s203 + $0x1a8] sm:$0xff]
        %v310 = vld [vmem:[%s203 + $0x1b0] sm:$0xff]
        %v311 = vld [vmem:[%s203 + $0x1b8] sm:$0xff]
        %v312 = vld [vmem:[%s203 + $0x1c0] sm:$0xff]
        %v313 = vld [vmem:[%s203 + $0x1c8] sm:$0xff]
        %v314 = vld [vmem:[%s203 + $0x1d0] sm:$0xff]
        %v315 = vld [vmem:[%s203 + $0x1d8] sm:$0xff]
        %v316 = vld [vmem:[%s203 + $0x1e0] sm:$0xff]
        %v317 = vld [vmem:[%s203 + $0x1e8] sm:$0xff]
        %v318 = vld [vmem:[%s203 + $0x1f0] sm:$0xff]
        %v319 = vld [vmem:[%s203 + $0x1f8] sm:$0xff]
        %v320 = vld [vmem:[%s203 + $0x200] sm:$0xff]
        %v321 = vld [vmem:[%s203 + $0x208] sm:$0xff]
        %v322 = vld [vmem:[%s203 + $0x210] sm:$0xff]
        %v323 = vld [vmem:[%s203 + $0x218] sm:$0xff]
        %v324 = vld [vmem:[%s203 + $0x220] sm:$0xff]
        %v325 = vld [vmem:[%s203 + $0x228] sm:$0xff]
        %v326 = vld [vmem:[%s203 + $0x230] sm:$0xff]
        %v327 = vld [vmem:[%s203 + $0x238] sm:$0xff]
        %v328 = vld [vmem:[%s203 + $0x240] sm:$0xff]
        %v329 = vld [vmem:[%s203 + $0x248] sm:$0xff]
        %v330 = vld [vmem:[%s203 + $0x250] sm:$0xff]
        %v331 = vld [vmem:[%s203 + $0x258] sm:$0xff]
        %v332 = vld [vmem:[%s203 + $0x260] sm:$0xff]
        %v333 = vld [vmem:[%s203 + $0x268] sm:$0xff]
        %v334 = vld [vmem:[%s203 + $0x270] sm:$0xff]
        %v335 = vld [vmem:[%s203 + $0x278] sm:$0xff]
        %v336 = vld [vmem:[%s203 + $0x280] sm:$0xff]
        %v337 = vld [vmem:[%s203 + $0x288] sm:$0xff]
        %v338 = vld [vmem:[%s203 + $0x290] sm:$0xff]
        %v339 = vld [vmem:[%s203 + $0x298] sm:$0xff]
        %v340 = vld [vmem:[%s203 + $0x2a0] sm:$0xff]
        %v341 = vld [vmem:[%s203 + $0x2a8] sm:$0xff]
        %v342 = vld [vmem:[%s203 + $0x2b0] sm:$0xff]
        %v343 = vld [vmem:[%s203 + $0x2b8] sm:$0xff]
        %v344 = vld [vmem:[%s203 + $0x2c0] sm:$0xff]
        %v345 = vld [vmem:[%s203 + $0x2c8] sm:$0xff]
        %v346 = vld [vmem:[%s203 + $0x2d0] sm:$0xff]
        %v347 = vld [vmem:[%s203 + $0x2d8] sm:$0xff]
        %v348 = vld [vmem:[%s203 + $0x2e0] sm:$0xff]
        %v349 = vld [vmem:[%s203 + $0x2e8] sm:$0xff]
        %v350 = vld [vmem:[%s203 + $0x2f0] sm:$0xff]
        %v351 = vld [vmem:[%s203 + $0x2f8] sm:$0xff]
        %v352 = vld [vmem:[%s203 + $0x300] sm:$0xff]
        %v353 = vld [vmem:[%s203 + $0x308] sm:$0xff]
        %v354 = vld [vmem:[%s203 + $0x310] sm:$0xff]
        %v355 = vld [vmem:[%s203 + $0x318] sm:$0xff]
        %v356 = vld [vmem:[%s203 + $0x320] sm:$0xff]
        %v357 = vld [vmem:[%s203 + $0x328] sm:$0xff]
        %v358 = vld [vmem:[%s203 + $0x330] sm:$0xff]
        %v359 = vld [vmem:[%s203 + $0x338] sm:$0xff]
        %v360 = vld [vmem:[%s203 + $0x340] sm:$0xff]
        %v361 = vld [vmem:[%s203 + $0x348] sm:$0xff]
        %v362 = vld [vmem:[%s203 + $0x350] sm:$0xff]
        %v363 = vld [vmem:[%s203 + $0x358] sm:$0xff]
        %v364 = vld [vmem:[%s203 + $0x360] sm:$0xff]
        %v365 = vld [vmem:[%s203 + $0x368] sm:$0xff]
        %v366 = vld [vmem:[%s203 + $0x370] sm:$0xff]
        %v367 = vld [vmem:[%s203 + $0x378] sm:$0xff]
        %v368 = vld [vmem:[%s203 + $0x380] sm:$0xff]
        %v369 = vld [vmem:[%s203 + $0x388] sm:$0xff]
        %v370 = vld [vmem:[%s203 + $0x390] sm:$0xff]
        %v371 = vld [vmem:[%s203 + $0x398] sm:$0xff]
        %v372 = vld [vmem:[%s203 + $0x3a0] sm:$0xff]
        %v373 = vld [vmem:[%s203 + $0x3a8] sm:$0xff]
        %v374 = vld [vmem:[%s203 + $0x3b0] sm:$0xff]
        %v375 = vld [vmem:[%s203 + $0x3b8] sm:$0xff]
        %v376 = vld [vmem:[%s203 + $0x3c0] sm:$0xff]
        %v377 = vld [vmem:[%s203 + $0x3c8] sm:$0xff]
        %v378 = vld [vmem:[%s203 + $0x3d0] sm:$0xff]
        %v379 = vld [vmem:[%s203 + $0x3d8] sm:$0xff]
        %v380 = vld [vmem:[%s203 + $0x3e0] sm:$0xff]
        %v381 = vld [vmem:[%s203 + $0x3e8] sm:$0xff]
        %v382 = vld [vmem:[%s203 + $0x3f0] sm:$0xff]
        %v383 = vld [vmem:[%s203 + $0x3f8] sm:$0xff]
        %v384 = vmul.f32 %v256, %v256
        %v385 = vmul.f32 %v257, %v257
        %v386 = vmul.f32 %v258, %v258
        %v387 = vmul.f32 %v259, %v259
        %v388 = vmul.f32 %v260, %v260
        %v389 = vmul.f32 %v261, %v261
        %v390 = vmul.f32 %v262, %v262
        %v391 = vmul.f32 %v263, %v263
        %v392 = vmul.f32 %v264, %v264
        %v393 = vmul.f32 %v265, %v265
        %v394 = vmul.f32 %v266, %v266
        %v395 = vmul.f32 %v267, %v267
        %v396 = vmul.f32 %v268, %v268
        %v397 = vmul.f32 %v269, %v269
        %v398 = vmul.f32 %v270, %v270
        %v399 = vmul.f32 %v271, %v271
        %v400 = vmul.f32 %v272, %v272
        %v401 = vmul.f32 %v273, %v273
        %v402 = vmul.f32 %v274, %v274
        %v403 = vmul.f32 %v275, %v275
        %v404 = vmul.f32 %v276, %v276
        %v405 = vmul.f32 %v277, %v277
        %v406 = vmul.f32 %v278, %v278
        %v407 = vmul.f32 %v279, %v279
        %v408 = vmul.f32 %v280, %v280
        %v409 = vmul.f32 %v281, %v281
        %v410 = vmul.f32 %v282, %v282
        %v411 = vmul.f32 %v283, %v283
        %v412 = vmul.f32 %v284, %v284
        %v413 = vmul.f32 %v285, %v285
        %v414 = vmul.f32 %v286, %v286
        %v415 = vmul.f32 %v287, %v287
        %v416 = vmul.f32 %v288, %v288
        %v417 = vmul.f32 %v289, %v289
        %v418 = vmul.f32 %v290, %v290
        %v419 = vmul.f32 %v291, %v291
        %v420 = vmul.f32 %v292, %v292
        %v421 = vmul.f32 %v293, %v293
        %v422 = vmul.f32 %v294, %v294
        %v423 = vmul.f32 %v295, %v295
        %v424 = vmul.f32 %v296, %v296
        %v425 = vmul.f32 %v297, %v297
        %v426 = vmul.f32 %v298, %v298
        %v427 = vmul.f32 %v299, %v299
        %v428 = vmul.f32 %v300, %v300
        %v429 = vmul.f32 %v301, %v301
        %v430 = vmul.f32 %v302, %v302
        %v431 = vmul.f32 %v303, %v303
        %v432 = vmul.f32 %v304, %v304
        %v433 = vmul.f32 %v305, %v305
        %v434 = vmul.f32 %v306, %v306
        %v435 = vmul.f32 %v307, %v307
        %v436 = vmul.f32 %v308, %v308
        %v437 = vmul.f32 %v309, %v309
        %v438 = vmul.f32 %v310, %v310
        %v439 = vmul.f32 %v311, %v311
        %v440 = vmul.f32 %v312, %v312
        %v441 = vmul.f32 %v313, %v313
        %v442 = vmul.f32 %v314, %v314
        %v443 = vmul.f32 %v315, %v315
        %v444 = vmul.f32 %v316, %v316
        %v445 = vmul.f32 %v317, %v317
        %v446 = vmul.f32 %v318, %v318
        %v447 = vmul.f32 %v319, %v319
        %v448 = vmul.f32 %v320, %v320
        %v449 = vmul.f32 %v321, %v321
        %v450 = vmul.f32 %v322, %v322
        %v451 = vmul.f32 %v323, %v323
        %v452 = vmul.f32 %v324, %v324
        %v453 = vmul.f32 %v325, %v325
        %v454 = vmul.f32 %v326, %v326
        %v455 = vmul.f32 %v327, %v327
        %v456 = vmul.f32 %v328, %v328
        %v457 = vmul.f32 %v329, %v329
        %v458 = vmul.f32 %v330, %v330
        %v459 = vmul.f32 %v331, %v331
        %v460 = vmul.f32 %v332, %v332
        %v461 = vmul.f32 %v333, %v333
        %v462 = vmul.f32 %v334, %v334
        %v463 = vmul.f32 %v335, %v335
        %v464 = vmul.f32 %v336, %v336
        %v465 = vmul.f32 %v337, %v337
        %v466 = vmul.f32 %v338, %v338
        %v467 = vmul.f32 %v339, %v339
        %v468 = vmul.f32 %v340, %v340
        %v469 = vmul.f32 %v341, %v341
        %v470 = vmul.f32 %v342, %v342
        %v471 = vmul.f32 %v343, %v343
        %v472 = vmul.f32 %v344, %v344
        %v473 = vmul.f32 %v345, %v345
        %v474 = vmul.f32 %v346, %v346
        %v475 = vmul.f32 %v347, %v347
        %v476 = vmul.f32 %v348, %v348
        %v477 = vmul.f32 %v349, %v349
        %v478 = vmul.f32 %v350, %v350
        %v479 = vmul.f32 %v351, %v351
        %v480 = vmul.f32 %v352, %v352
        %v481 = vmul.f32 %v353, %v353
        %v482 = vmul.f32 %v354, %v354
        %v483 = vmul.f32 %v355, %v355
        %v484 = vmul.f32 %v356, %v356
        %v485 = vmul.f32 %v357, %v357
        %v486 = vmul.f32 %v358, %v358
        %v487 = vmul.f32 %v359, %v359
        %v488 = vmul.f32 %v360, %v360
        %v489 = vmul.f32 %v361, %v361
        %v490 = vmul.f32 %v362, %v362
        %v491 = vmul.f32 %v363, %v363
        %v492 = vmul.f32 %v364, %v364
        %v493 = vmul.f32 %v365, %v365
        %v494 = vmul.f32 %v366, %v366
        %v495 = vmul.f32 %v367, %v367
        %v496 = vmul.f32 %v368, %v368
        %v497 = vmul.f32 %v369, %v369
        %v498 = vmul.f32 %v370, %v370
        %v499 = vmul.f32 %v371, %v371
        %v500 = vmul.f32 %v372, %v372
        %v501 = vmul.f32 %v373, %v373
        %v502 = vmul.f32 %v374, %v374
        %v503 = vmul.f32 %v375, %v375
        %v504 = vmul.f32 %v376, %v376
        %v505 = vmul.f32 %v377, %v377
        %v506 = vmul.f32 %v378, %v378
        %v507 = vmul.f32 %v379, %v379
        %v508 = vmul.f32 %v380, %v380
        %v509 = vmul.f32 %v381, %v381
        %v510 = vmul.f32 %v382, %v382
        %v511 = vmul.f32 %v383, %v383
        %v512 = vadd.f32 %v384, %v392
        %v513 = vadd.f32 %v512, %v400
        %v514 = vadd.f32 %v513, %v408
        %v515 = vadd.f32 %v514, %v416
        %v516 = vadd.f32 %v515, %v424
        %v517 = vadd.f32 %v516, %v432
        %v518 = vadd.f32 %v517, %v440
        %v519 = vadd.f32 %v518, %v448
        %v520 = vadd.f32 %v519, %v456
        %v521 = vadd.f32 %v520, %v464
        %v522 = vadd.f32 %v521, %v472
        %v523 = vadd.f32 %v522, %v480
        %v524 = vadd.f32 %v523, %v488
        %v525 = vadd.f32 %v524, %v496
        %v526 = vadd.f32 %v525, %v504
        %v527 = vrot.slane %v526, 4
        %v528 = vadd.f32 %v526, %v527
        %v529 = vrot.slane %v528, 2
        %v530 = vadd.f32 %v528, %v529
        %v531 = vrot.slane %v530, 1
        %v532 = vadd.f32 %v530, %v531
        %v533 = vadd.f32 %v385, %v393
        %v534 = vadd.f32 %v533, %v401
        %v535 = vadd.f32 %v534, %v409
        %v536 = vadd.f32 %v535, %v417
        %v537 = vadd.f32 %v536, %v425
        %v538 = vadd.f32 %v537, %v433
        %v539 = vadd.f32 %v538, %v441
        %v540 = vadd.f32 %v539, %v449
        %v541 = vadd.f32 %v540, %v457
        %v542 = vadd.f32 %v541, %v465
        %v543 = vadd.f32 %v542, %v473
        %v544 = vadd.f32 %v543, %v481
        %v545 = vadd.f32 %v544, %v489
        %v546 = vadd.f32 %v545, %v497
        %v547 = vadd.f32 %v546, %v505
        %v548 = vrot.slane %v547, 4
        %v549 = vadd.f32 %v547, %v548
        %v550 = vrot.slane %v549, 2
        %v551 = vadd.f32 %v549, %v550
        %v552 = vrot.slane %v551, 1
        %v553 = vadd.f32 %v551, %v552
        %v554 = vadd.f32 %v386, %v394
        %v555 = vadd.f32 %v554, %v402
        %v556 = vadd.f32 %v555, %v410
        %v557 = vadd.f32 %v556, %v418
        %v558 = vadd.f32 %v557, %v426
        %v559 = vadd.f32 %v558, %v434
        %v560 = vadd.f32 %v559, %v442
        %v561 = vadd.f32 %v560, %v450
        %v562 = vadd.f32 %v561, %v458
        %v563 = vadd.f32 %v562, %v466
        %v564 = vadd.f32 %v563, %v474
        %v565 = vadd.f32 %v564, %v482
        %v566 = vadd.f32 %v565, %v490
        %v567 = vadd.f32 %v566, %v498
        %v568 = vadd.f32 %v567, %v506
        %v569 = vrot.slane %v568, 4
        %v570 = vadd.f32 %v568, %v569
        %v571 = vrot.slane %v570, 2
        %v572 = vadd.f32 %v570, %v571
        %v573 = vrot.slane %v572, 1
        %v574 = vadd.f32 %v572, %v573
        %v575 = vadd.f32 %v387, %v395
        %v576 = vadd.f32 %v575, %v403
        %v577 = vadd.f32 %v576, %v411
        %v578 = vadd.f32 %v577, %v419
        %v579 = vadd.f32 %v578, %v427
        %v580 = vadd.f32 %v579, %v435
        %v581 = vadd.f32 %v580, %v443
        %v582 = vadd.f32 %v581, %v451
        %v583 = vadd.f32 %v582, %v459
        %v584 = vadd.f32 %v583, %v467
        %v585 = vadd.f32 %v584, %v475
        %v586 = vadd.f32 %v585, %v483
        %v587 = vadd.f32 %v586, %v491
        %v588 = vadd.f32 %v587, %v499
        %v589 = vadd.f32 %v588, %v507
        %v590 = vrot.slane %v589, 4
        %v591 = vadd.f32 %v589, %v590
        %v592 = vrot.slane %v591, 2
        %v593 = vadd.f32 %v591, %v592
        %v594 = vrot.slane %v593, 1
        %v595 = vadd.f32 %v593, %v594
        %v596 = vadd.f32 %v388, %v396
        %v597 = vadd.f32 %v596, %v404
        %v598 = vadd.f32 %v597, %v412
        %v599 = vadd.f32 %v598, %v420
        %v600 = vadd.f32 %v599, %v428
        %v601 = vadd.f32 %v600, %v436
        %v602 = vadd.f32 %v601, %v444
        %v603 = vadd.f32 %v602, %v452
        %v604 = vadd.f32 %v603, %v460
        %v605 = vadd.f32 %v604, %v468
        %v606 = vadd.f32 %v605, %v476
        %v607 = vadd.f32 %v606, %v484
        %v608 = vadd.f32 %v607, %v492
        %v609 = vadd.f32 %v608, %v500
        %v610 = vadd.f32 %v609, %v508
        %v611 = vrot.slane %v610, 4
        %v612 = vadd.f32 %v610, %v611
        %v613 = vrot.slane %v612, 2
        %v614 = vadd.f32 %v612, %v613
        %v615 = vrot.slane %v614, 1
        %v616 = vadd.f32 %v614, %v615
        %v617 = vadd.f32 %v389, %v397
        %v618 = vadd.f32 %v617, %v405
        %v619 = vadd.f32 %v618, %v413
        %v620 = vadd.f32 %v619, %v421
        %v621 = vadd.f32 %v620, %v429
        %v622 = vadd.f32 %v621, %v437
        %v623 = vadd.f32 %v622, %v445
        %v624 = vadd.f32 %v623, %v453
        %v625 = vadd.f32 %v624, %v461
        %v626 = vadd.f32 %v625, %v469
        %v627 = vadd.f32 %v626, %v477
        %v628 = vadd.f32 %v627, %v485
        %v629 = vadd.f32 %v628, %v493
        %v630 = vadd.f32 %v629, %v501
        %v631 = vadd.f32 %v630, %v509
        %v632 = vrot.slane %v631, 4
        %v633 = vadd.f32 %v631, %v632
        %v634 = vrot.slane %v633, 2
        %v635 = vadd.f32 %v633, %v634
        %v636 = vrot.slane %v635, 1
        %v637 = vadd.f32 %v635, %v636
        %v638 = vadd.f32 %v390, %v398
        %v639 = vadd.f32 %v638, %v406
        %v640 = vadd.f32 %v639, %v414
        %v641 = vadd.f32 %v640, %v422
        %v642 = vadd.f32 %v641, %v430
        %v643 = vadd.f32 %v642, %v438
        %v644 = vadd.f32 %v643, %v446
        %v645 = vadd.f32 %v644, %v454
        %v646 = vadd.f32 %v645, %v462
        %v647 = vadd.f32 %v646, %v470
        %v648 = vadd.f32 %v647, %v478
        %v649 = vadd.f32 %v648, %v486
        %v650 = vadd.f32 %v649, %v494
        %v651 = vadd.f32 %v650, %v502
        %v652 = vadd.f32 %v651, %v510
        %v653 = vrot.slane %v652, 4
        %v654 = vadd.f32 %v652, %v653
        %v655 = vrot.slane %v654, 2
        %v656 = vadd.f32 %v654, %v655
        %v657 = vrot.slane %v656, 1
        %v658 = vadd.f32 %v656, %v657
        %v659 = vadd.f32 %v391, %v399
        %v660 = vadd.f32 %v659, %v407
        %v661 = vadd.f32 %v660, %v415
        %v662 = vadd.f32 %v661, %v423
        %v663 = vadd.f32 %v662, %v431
        %v664 = vadd.f32 %v663, %v439
        %v665 = vadd.f32 %v664, %v447
        %v666 = vadd.f32 %v665, %v455
        %v667 = vadd.f32 %v666, %v463
        %v668 = vadd.f32 %v667, %v471
        %v669 = vadd.f32 %v668, %v479
        %v670 = vadd.f32 %v669, %v487
        %v671 = vadd.f32 %v670, %v495
        %v672 = vadd.f32 %v671, %v503
        %v673 = vadd.f32 %v672, %v511
        %v674 = vrot.slane %v673, 4
        %v675 = vadd.f32 %v673, %v674
        %v676 = vrot.slane %v675, 2
        %v677 = vadd.f32 %v675, %v676
        %v678 = vrot.slane %v677, 1
        %v679 = vadd.f32 %v677, %v678
        %v680 = vmax.f32 %v532, 1e-24
        %v681 = vmax.f32 %v553, 1e-24
        %v682 = vmax.f32 %v574, 1e-24
        %v683 = vmax.f32 %v595, 1e-24
        %v684 = vmax.f32 %v616, 1e-24
        %v685 = vmax.f32 %v637, 1e-24
        %v686 = vmax.f32 %v658, 1e-24
        %v687 = vmax.f32 %v679, 1e-24
        %v688 = vrsqrt.pop %v680
        %v689 = vrsqrt.pop %v681
        %v690 = vrsqrt.pop %v682
        %v691 = vrsqrt.pop %v683
        %v692 = vrsqrt.pop %v684
        %v693 = vrsqrt.pop %v685
        %v694 = vrsqrt.pop %v686
        %v695 = vrsqrt.pop %v687
        %v696 = vld [vmem:[#allocation7] sm:$0xff]
        %v697 = vld [vmem:[#allocation7 + $0x8] sm:$0xff]
        %v698 = vld [vmem:[#allocation7 + $0x10] sm:$0xff]
        %v699 = vld [vmem:[#allocation7 + $0x18] sm:$0xff]
        %v700 = vld [vmem:[#allocation7 + $0x20] sm:$0xff]
        %v701 = vld [vmem:[#allocation7 + $0x28] sm:$0xff]
        %v702 = vld [vmem:[#allocation7 + $0x30] sm:$0xff]
        %v703 = vld [vmem:[#allocation7 + $0x38] sm:$0xff]
        %704 = vmatprep.subr.mxu0 %v377
        %705 = vmatpush1.msra.mxu0 %v376
        %706 = vmatprep.subr.mxu0 %v369
        %707 = vmatpush1.msra.mxu0 %v368
        %708 = vmatprep.subr.mxu0 %v361
        %709 = vmatpush1.msra.mxu0 %v360
        %710 = vmatprep.subr.mxu0 %v353
        %711 = vmatpush1.msra.mxu0 %v352
        %712 = vmatprep.subr.mxu0 %v345
        %713 = vmatpush1.msra.mxu0 %v344
        %714 = vmatprep.subr.mxu0 %v337
        %715 = vmatpush1.msra.mxu0 %v336
        %716 = vmatprep.subr.mxu0 %v329
        %717 = vmatpush1.msra.mxu0 %v328
        %718 = vmatprep.subr.mxu0 %v321
        %719 = vmatpush1.msra.mxu0 %v320
        %720 = vmatprep.subr.mxu0 %v313
        %721 = vmatpush1.msra.mxu0 %v312
        %722 = vmatprep.subr.mxu0 %v305
        %723 = vmatpush1.msra.mxu0 %v304
        %724 = vmatprep.subr.mxu0 %v297
        %725 = vmatpush1.msra.mxu0 %v296
        %726 = vmatprep.subr.mxu0 %v289
        %727 = vmatpush1.msra.mxu0 %v288
        %728 = vmatprep.subr.mxu0 %v281
        %729 = vmatpush1.msra.mxu0 %v280
        %730 = vmatprep.subr.mxu0 %v273
        %731 = vmatpush1.msra.mxu0 %v272
        %732 = vmatprep.subr.mxu0 %v265
        %733 = vmatpush1.msra.mxu0 %v264
        %734 = vmatprep.subr.mxu0 %v257
        %735 = vmatpush1.msra.mxu0 %v256
        %736 = vmatprep.subr.mxu0 0.0
        %737 = vmatpush2.msra.mxu0 0.0
        %738 = vmatprep.subr.mxu0 0.0
        %739 = vmatpush2.msra.mxu0 0.0
        %740 = vmatprep.subr.mxu0 0.0
        %741 = vmatpush2.msra.mxu0 0.0
        %742 = vmatprep.subr.mxu0 0.0
        %743 = vmatpush2.msra.mxu0 0.0
        %744 = vmatprep.subr.mxu0 0.0
        %745 = vmatpush2.msra.mxu0 0.0
        %746 = vmatprep.subr.mxu0 0.0
        %747 = vmatpush2.msra.mxu0 0.0
        %748 = vmatprep.subr.mxu0 0.0
        %749 = vmatpush2.msra.mxu0 0.0
        %750 = vmatprep.subr.mxu0 0.0
        %751 = vmatpush2.msra.mxu0 0.0
        %752 = vmatprep.subr.mxu0 0.0
        %753 = vmatpush2.msra.mxu0 0.0
        %754 = vmatprep.subr.mxu0 0.0
        %755 = vmatpush2.msra.mxu0 0.0
        %756 = vmatprep.subr.mxu0 0.0
        %757 = vmatpush2.msra.mxu0 0.0
        %758 = vmatprep.subr.mxu0 0.0
        %759 = vmatpush2.msra.mxu0 0.0
        %760 = vmatprep.subr.mxu0 0.0
        %761 = vmatpush2.msra.mxu0 0.0
        %762 = vmatprep.subr.mxu0 0.0
        %763 = vmatpush2.msra.mxu0 0.0
        %764 = vmatprep.subr.mxu0 0.0
        %765 = vmatpush2.msra.mxu0 0.0
        %766 = vmatprep.subr.mxu0 0.0
        %767 = vmatpush2.msra.mxu0 0.0
        %768 = vmatprep.mubr.f32.mxu0 0.0
        %769 = vmatmul.mubr.f32.gmra.mxu0 %v696
        %v770 = vpop.f32.mrf.mxu0
        %v771 = vadd.f32 0.0, %v770
        %v772 = vpop.f32.mrf.mxu0
        %v773 = vadd.f32 0.0, %v772
        %774 = vmatprep.mubr.f32.mxu0 0.0
        %775 = vmatmul.mubr.f32.gmra.mxu0 %v697
        %v776 = vpop.f32.mrf.mxu0
        %v777 = vadd.f32 0.0, %v776
        %v778 = vpop.f32.mrf.mxu0
        %v779 = vadd.f32 0.0, %v778
        %780 = vmatprep.mubr.f32.mxu0 0.0
        %781 = vmatmul.mubr.f32.gmra.mxu0 %v698
        %v782 = vpop.f32.mrf.mxu0
        %v783 = vadd.f32 0.0, %v782
        %v784 = vpop.f32.mrf.mxu0
        %v785 = vadd.f32 0.0, %v784
        %786 = vmatprep.mubr.f32.mxu0 0.0
        %787 = vmatmul.mubr.f32.gmra.mxu0 %v699
        %v788 = vpop.f32.mrf.mxu0
        %v789 = vadd.f32 0.0, %v788
        %v790 = vpop.f32.mrf.mxu0
        %v791 = vadd.f32 0.0, %v790
        %792 = vmatprep.mubr.f32.mxu0 0.0
        %793 = vmatmul.mubr.f32.gmra.mxu0 %v700
        %v794 = vpop.f32.mrf.mxu0
        %v795 = vadd.f32 0.0, %v794
        %v796 = vpop.f32.mrf.mxu0
        %v797 = vadd.f32 0.0, %v796
        %798 = vmatprep.mubr.f32.mxu0 0.0
        %799 = vmatmul.mubr.f32.gmra.mxu0 %v701
        %v800 = vpop.f32.mrf.mxu0
        %v801 = vadd.f32 0.0, %v800
        %v802 = vpop.f32.mrf.mxu0
        %v803 = vadd.f32 0.0, %v802
        %804 = vmatprep.mubr.f32.mxu0 0.0
        %805 = vmatmul.mubr.f32.gmra.mxu0 %v702
        %v806 = vpop.f32.mrf.mxu0
        %v807 = vadd.f32 0.0, %v806
        %v808 = vpop.f32.mrf.mxu0
        %v809 = vadd.f32 0.0, %v808
        %810 = vmatprep.mubr.f32.mxu0 0.0
        %811 = vmatmul.mubr.f32.gmra.mxu0 %v703
        %v812 = vpop.f32.mrf.mxu0
        %v813 = vadd.f32 0.0, %v812
        %v814 = vpop.f32.mrf.mxu0
        %v815 = vadd.f32 0.0, %v814
        %816 = vdwg.mxu0
        %817 = vmatprep.subr.mxu0 %v379
        %818 = vmatpush1.msra.mxu0 %v378
        %819 = vmatprep.subr.mxu0 %v371
        %820 = vmatpush1.msra.mxu0 %v370
        %821 = vmatprep.subr.mxu0 %v363
        %822 = vmatpush1.msra.mxu0 %v362
        %823 = vmatprep.subr.mxu0 %v355
        %824 = vmatpush1.msra.mxu0 %v354
        %825 = vmatprep.subr.mxu0 %v347
        %826 = vmatpush1.msra.mxu0 %v346
        %827 = vmatprep.subr.mxu0 %v339
        %828 = vmatpush1.msra.mxu0 %v338
        %829 = vmatprep.subr.mxu0 %v331
        %830 = vmatpush1.msra.mxu0 %v330
        %831 = vmatprep.subr.mxu0 %v323
        %832 = vmatpush1.msra.mxu0 %v322
        %833 = vmatprep.subr.mxu0 %v315
        %834 = vmatpush1.msra.mxu0 %v314
        %835 = vmatprep.subr.mxu0 %v307
        %836 = vmatpush1.msra.mxu0 %v306
        %837 = vmatprep.subr.mxu0 %v299
        %838 = vmatpush1.msra.mxu0 %v298
        %839 = vmatprep.subr.mxu0 %v291
        %840 = vmatpush1.msra.mxu0 %v290
        %841 = vmatprep.subr.mxu0 %v283
        %842 = vmatpush1.msra.mxu0 %v282
        %843 = vmatprep.subr.mxu0 %v275
        %844 = vmatpush1.msra.mxu0 %v274
        %845 = vmatprep.subr.mxu0 %v267
        %846 = vmatpush1.msra.mxu0 %v266
        %847 = vmatprep.subr.mxu0 %v259
        %848 = vmatpush1.msra.mxu0 %v258
        %849 = vmatprep.subr.mxu0 0.0
        %850 = vmatpush2.msra.mxu0 0.0
        %851 = vmatprep.subr.mxu0 0.0
        %852 = vmatpush2.msra.mxu0 0.0
        %853 = vmatprep.subr.mxu0 0.0
        %854 = vmatpush2.msra.mxu0 0.0
        %855 = vmatprep.subr.mxu0 0.0
        %856 = vmatpush2.msra.mxu0 0.0
        %857 = vmatprep.subr.mxu0 0.0
        %858 = vmatpush2.msra.mxu0 0.0
        %859 = vmatprep.subr.mxu0 0.0
        %860 = vmatpush2.msra.mxu0 0.0
        %861 = vmatprep.subr.mxu0 0.0
        %862 = vmatpush2.msra.mxu0 0.0
        %863 = vmatprep.subr.mxu0 0.0
        %864 = vmatpush2.msra.mxu0 0.0
        %865 = vmatprep.subr.mxu0 0.0
        %866 = vmatpush2.msra.mxu0 0.0
        %867 = vmatprep.subr.mxu0 0.0
        %868 = vmatpush2.msra.mxu0 0.0
        %869 = vmatprep.subr.mxu0 0.0
        %870 = vmatpush2.msra.mxu0 0.0
        %871 = vmatprep.subr.mxu0 0.0
        %872 = vmatpush2.msra.mxu0 0.0
        %873 = vmatprep.subr.mxu0 0.0
        %874 = vmatpush2.msra.mxu0 0.0
        %875 = vmatprep.subr.mxu0 0.0
        %876 = vmatpush2.msra.mxu0 0.0
        %877 = vmatprep.subr.mxu0 0.0
        %878 = vmatpush2.msra.mxu0 0.0
        %879 = vmatprep.subr.mxu0 0.0
        %880 = vmatpush2.msra.mxu0 0.0
        %881 = vmatprep.mubr.f32.mxu0 0.0
        %882 = vmatmul.mubr.f32.gmra.mxu0 %v696
        %v883 = vpop.f32.mrf.mxu0
        %v884 = vadd.f32 0.0, %v883
        %v885 = vpop.f32.mrf.mxu0
        %v886 = vadd.f32 0.0, %v885
        %887 = vmatprep.mubr.f32.mxu0 0.0
        %888 = vmatmul.mubr.f32.gmra.mxu0 %v697
        %v889 = vpop.f32.mrf.mxu0
        %v890 = vadd.f32 0.0, %v889
        %v891 = vpop.f32.mrf.mxu0
        %v892 = vadd.f32 0.0, %v891
        %893 = vmatprep.mubr.f32.mxu0 0.0
        %894 = vmatmul.mubr.f32.gmra.mxu0 %v698
        %v895 = vpop.f32.mrf.mxu0
        %v896 = vadd.f32 0.0, %v895
        %v897 = vpop.f32.mrf.mxu0
        %v898 = vadd.f32 0.0, %v897
        %899 = vmatprep.mubr.f32.mxu0 0.0
        %900 = vmatmul.mubr.f32.gmra.mxu0 %v699
        %v901 = vpop.f32.mrf.mxu0
        %v902 = vadd.f32 0.0, %v901
        %v903 = vpop.f32.mrf.mxu0
        %v904 = vadd.f32 0.0, %v903
        %905 = vmatprep.mubr.f32.mxu0 0.0
        %906 = vmatmul.mubr.f32.gmra.mxu0 %v700
        %v907 = vpop.f32.mrf.mxu0
        %v908 = vadd.f32 0.0, %v907
        %v909 = vpop.f32.mrf.mxu0
        %v910 = vadd.f32 0.0, %v909
        %911 = vmatprep.mubr.f32.mxu0 0.0
        %912 = vmatmul.mubr.f32.gmra.mxu0 %v701
        %v913 = vpop.f32.mrf.mxu0
        %v914 = vadd.f32 0.0, %v913
        %v915 = vpop.f32.mrf.mxu0
        %v916 = vadd.f32 0.0, %v915
        %917 = vmatprep.mubr.f32.mxu0 0.0
        %918 = vmatmul.mubr.f32.gmra.mxu0 %v702
        %v919 = vpop.f32.mrf.mxu0
        %v920 = vadd.f32 0.0, %v919
        %v921 = vpop.f32.mrf.mxu0
        %v922 = vadd.f32 0.0, %v921
        %923 = vmatprep.mubr.f32.mxu0 0.0
        %924 = vmatmul.mubr.f32.gmra.mxu0 %v703
        %v925 = vpop.f32.mrf.mxu0
        %v926 = vadd.f32 0.0, %v925
        %v927 = vpop.f32.mrf.mxu0
        %v928 = vadd.f32 0.0, %v927
        %929 = vdwg.mxu0
        %930 = vmatprep.subr.mxu0 %v381
        %931 = vmatpush1.msra.mxu0 %v380
        %932 = vmatprep.subr.mxu0 %v373
        %933 = vmatpush1.msra.mxu0 %v372
        %934 = vmatprep.subr.mxu0 %v365
        %935 = vmatpush1.msra.mxu0 %v364
        %936 = vmatprep.subr.mxu0 %v357
        %937 = vmatpush1.msra.mxu0 %v356
        %938 = vmatprep.subr.mxu0 %v349
        %939 = vmatpush1.msra.mxu0 %v348
        %940 = vmatprep.subr.mxu0 %v341
        %941 = vmatpush1.msra.mxu0 %v340
        %942 = vmatprep.subr.mxu0 %v333
        %943 = vmatpush1.msra.mxu0 %v332
        %944 = vmatprep.subr.mxu0 %v325
        %945 = vmatpush1.msra.mxu0 %v324
        %946 = vmatprep.subr.mxu0 %v317
        %947 = vmatpush1.msra.mxu0 %v316
        %948 = vmatprep.subr.mxu0 %v309
        %949 = vmatpush1.msra.mxu0 %v308
        %950 = vmatprep.subr.mxu0 %v301
        %951 = vmatpush1.msra.mxu0 %v300
        %952 = vmatprep.subr.mxu0 %v293
        %953 = vmatpush1.msra.mxu0 %v292
        %954 = vmatprep.subr.mxu0 %v285
        %955 = vmatpush1.msra.mxu0 %v284
        %956 = vmatprep.subr.mxu0 %v277
        %957 = vmatpush1.msra.mxu0 %v276
        %958 = vmatprep.subr.mxu0 %v269
        %959 = vmatpush1.msra.mxu0 %v268
        %960 = vmatprep.subr.mxu0 %v261
        %961 = vmatpush1.msra.mxu0 %v260
        %962 = vmatprep.subr.mxu0 0.0
        %963 = vmatpush2.msra.mxu0 0.0
        %964 = vmatprep.subr.mxu0 0.0
        %965 = vmatpush2.msra.mxu0 0.0
        %966 = vmatprep.subr.mxu0 0.0
        %967 = vmatpush2.msra.mxu0 0.0
        %968 = vmatprep.subr.mxu0 0.0
        %969 = vmatpush2.msra.mxu0 0.0
        %970 = vmatprep.subr.mxu0 0.0
        %971 = vmatpush2.msra.mxu0 0.0
        %972 = vmatprep.subr.mxu0 0.0
        %973 = vmatpush2.msra.mxu0 0.0
        %974 = vmatprep.subr.mxu0 0.0
        %975 = vmatpush2.msra.mxu0 0.0
        %976 = vmatprep.subr.mxu0 0.0
        %977 = vmatpush2.msra.mxu0 0.0
        %978 = vmatprep.subr.mxu0 0.0
        %979 = vmatpush2.msra.mxu0 0.0
        %980 = vmatprep.subr.mxu0 0.0
        %981 = vmatpush2.msra.mxu0 0.0
        %982 = vmatprep.subr.mxu0 0.0
        %983 = vmatpush2.msra.mxu0 0.0
        %984 = vmatprep.subr.mxu0 0.0
        %985 = vmatpush2.msra.mxu0 0.0
        %986 = vmatprep.subr.mxu0 0.0
        %987 = vmatpush2.msra.mxu0 0.0
        %988 = vmatprep.subr.mxu0 0.0
        %989 = vmatpush2.msra.mxu0 0.0
        %990 = vmatprep.subr.mxu0 0.0
        %991 = vmatpush2.msra.mxu0 0.0
        %992 = vmatprep.subr.mxu0 0.0
        %993 = vmatpush2.msra.mxu0 0.0
        %994 = vmatprep.mubr.f32.mxu0 0.0
        %995 = vmatmul.mubr.f32.gmra.mxu0 %v696
        %v996 = vpop.f32.mrf.mxu0
        %v997 = vadd.f32 0.0, %v996
        %v998 = vpop.f32.mrf.mxu0
        %v999 = vadd.f32 0.0, %v998
        %1000 = vmatprep.mubr.f32.mxu0 0.0
        %1001 = vmatmul.mubr.f32.gmra.mxu0 %v697
        %v1002 = vpop.f32.mrf.mxu0
        %v1003 = vadd.f32 0.0, %v1002
        %v1004 = vpop.f32.mrf.mxu0
        %v1005 = vadd.f32 0.0, %v1004
        %1006 = vmatprep.mubr.f32.mxu0 0.0
        %1007 = vmatmul.mubr.f32.gmra.mxu0 %v698
        %v1008 = vpop.f32.mrf.mxu0
        %v1009 = vadd.f32 0.0, %v1008
        %v1010 = vpop.f32.mrf.mxu0
        %v1011 = vadd.f32 0.0, %v1010
        %1012 = vmatprep.mubr.f32.mxu0 0.0
        %1013 = vmatmul.mubr.f32.gmra.mxu0 %v699
        %v1014 = vpop.f32.mrf.mxu0
        %v1015 = vadd.f32 0.0, %v1014
        %v1016 = vpop.f32.mrf.mxu0
        %v1017 = vadd.f32 0.0, %v1016
        %1018 = vmatprep.mubr.f32.mxu0 0.0
        %1019 = vmatmul.mubr.f32.gmra.mxu0 %v700
        %v1020 = vpop.f32.mrf.mxu0
        %v1021 = vadd.f32 0.0, %v1020
        %v1022 = vpop.f32.mrf.mxu0
        %v1023 = vadd.f32 0.0, %v1022
        %1024 = vmatprep.mubr.f32.mxu0 0.0
        %1025 = vmatmul.mubr.f32.gmra.mxu0 %v701
        %v1026 = vpop.f32.mrf.mxu0
        %v1027 = vadd.f32 0.0, %v1026
        %v1028 = vpop.f32.mrf.mxu0
        %v1029 = vadd.f32 0.0, %v1028
        %1030 = vmatprep.mubr.f32.mxu0 0.0
        %1031 = vmatmul.mubr.f32.gmra.mxu0 %v702
        %v1032 = vpop.f32.mrf.mxu0
        %v1033 = vadd.f32 0.0, %v1032
        %v1034 = vpop.f32.mrf.mxu0
        %v1035 = vadd.f32 0.0, %v1034
        %1036 = vmatprep.mubr.f32.mxu0 0.0
        %1037 = vmatmul.mubr.f32.gmra.mxu0 %v703
        %v1038 = vpop.f32.mrf.mxu0
        %v1039 = vadd.f32 0.0, %v1038
        %v1040 = vpop.f32.mrf.mxu0
        %v1041 = vadd.f32 0.0, %v1040
        %1042 = vdwg.mxu0
        %1043 = vmatprep.subr.mxu0 %v383
        %1044 = vmatpush1.msra.mxu0 %v382
        %1045 = vmatprep.subr.mxu0 %v375
        %1046 = vmatpush1.msra.mxu0 %v374
        %1047 = vmatprep.subr.mxu0 %v367
        %1048 = vmatpush1.msra.mxu0 %v366
        %1049 = vmatprep.subr.mxu0 %v359
        %1050 = vmatpush1.msra.mxu0 %v358
        %1051 = vmatprep.subr.mxu0 %v351
        %1052 = vmatpush1.msra.mxu0 %v350
        %1053 = vmatprep.subr.mxu0 %v343
        %1054 = vmatpush1.msra.mxu0 %v342
        %1055 = vmatprep.subr.mxu0 %v335
        %1056 = vmatpush1.msra.mxu0 %v334
        %1057 = vmatprep.subr.mxu0 %v327
        %1058 = vmatpush1.msra.mxu0 %v326
        %1059 = vmatprep.subr.mxu0 %v319
        %1060 = vmatpush1.msra.mxu0 %v318
        %1061 = vmatprep.subr.mxu0 %v311
        %1062 = vmatpush1.msra.mxu0 %v310
        %1063 = vmatprep.subr.mxu0 %v303
        %1064 = vmatpush1.msra.mxu0 %v302
        %1065 = vmatprep.subr.mxu0 %v295
        %1066 = vmatpush1.msra.mxu0 %v294
        %1067 = vmatprep.subr.mxu0 %v287
        %1068 = vmatpush1.msra.mxu0 %v286
        %1069 = vmatprep.subr.mxu0 %v279
        %1070 = vmatpush1.msra.mxu0 %v278
        %1071 = vmatprep.subr.mxu0 %v271
        %1072 = vmatpush1.msra.mxu0 %v270
        %1073 = vmatprep.subr.mxu0 %v263
        %1074 = vmatpush1.msra.mxu0 %v262
        %1075 = vmatprep.subr.mxu0 0.0
        %1076 = vmatpush2.msra.mxu0 0.0
        %1077 = vmatprep.subr.mxu0 0.0
        %1078 = vmatpush2.msra.mxu0 0.0
        %1079 = vmatprep.subr.mxu0 0.0
        %1080 = vmatpush2.msra.mxu0 0.0
        %1081 = vmatprep.subr.mxu0 0.0
        %1082 = vmatpush2.msra.mxu0 0.0
        %1083 = vmatprep.subr.mxu0 0.0
        %1084 = vmatpush2.msra.mxu0 0.0
        %1085 = vmatprep.subr.mxu0 0.0
        %1086 = vmatpush2.msra.mxu0 0.0
        %1087 = vmatprep.subr.mxu0 0.0
        %1088 = vmatpush2.msra.mxu0 0.0
        %1089 = vmatprep.subr.mxu0 0.0
        %1090 = vmatpush2.msra.mxu0 0.0
        %1091 = vmatprep.subr.mxu0 0.0
        %1092 = vmatpush2.msra.mxu0 0.0
        %1093 = vmatprep.subr.mxu0 0.0
        %1094 = vmatpush2.msra.mxu0 0.0
        %1095 = vmatprep.subr.mxu0 0.0
        %1096 = vmatpush2.msra.mxu0 0.0
        %1097 = vmatprep.subr.mxu0 0.0
        %1098 = vmatpush2.msra.mxu0 0.0
        %1099 = vmatprep.subr.mxu0 0.0
        %1100 = vmatpush2.msra.mxu0 0.0
        %1101 = vmatprep.subr.mxu0 0.0
        %1102 = vmatpush2.msra.mxu0 0.0
        %1103 = vmatprep.subr.mxu0 0.0
        %1104 = vmatpush2.msra.mxu0 0.0
        %1105 = vmatprep.subr.mxu0 0.0
        %1106 = vmatpush2.msra.mxu0 0.0
        %1107 = vmatprep.mubr.f32.mxu0 0.0
        %1108 = vmatmul.mubr.f32.gmra.mxu0 %v696
        %v1109 = vpop.f32.mrf.mxu0
        %v1110 = vadd.f32 0.0, %v1109
        %v1111 = vpop.f32.mrf.mxu0
        %v1112 = vadd.f32 0.0, %v1111
        %1113 = vmatprep.mubr.f32.mxu0 0.0
        %1114 = vmatmul.mubr.f32.gmra.mxu0 %v697
        %v1115 = vpop.f32.mrf.mxu0
        %v1116 = vadd.f32 0.0, %v1115
        %v1117 = vpop.f32.mrf.mxu0
        %v1118 = vadd.f32 0.0, %v1117
        %1119 = vmatprep.mubr.f32.mxu0 0.0
        %1120 = vmatmul.mubr.f32.gmra.mxu0 %v698
        %v1121 = vpop.f32.mrf.mxu0
        %v1122 = vadd.f32 0.0, %v1121
        %v1123 = vpop.f32.mrf.mxu0
        %v1124 = vadd.f32 0.0, %v1123
        %1125 = vmatprep.mubr.f32.mxu0 0.0
        %1126 = vmatmul.mubr.f32.gmra.mxu0 %v699
        %v1127 = vpop.f32.mrf.mxu0
        %v1128 = vadd.f32 0.0, %v1127
        %v1129 = vpop.f32.mrf.mxu0
        %v1130 = vadd.f32 0.0, %v1129
        %1131 = vmatprep.mubr.f32.mxu0 0.0
        %1132 = vmatmul.mubr.f32.gmra.mxu0 %v700
        %v1133 = vpop.f32.mrf.mxu0
        %v1134 = vadd.f32 0.0, %v1133
        %v1135 = vpop.f32.mrf.mxu0
        %v1136 = vadd.f32 0.0, %v1135
        %1137 = vmatprep.mubr.f32.mxu0 0.0
        %1138 = vmatmul.mubr.f32.gmra.mxu0 %v701
        %v1139 = vpop.f32.mrf.mxu0
        %v1140 = vadd.f32 0.0, %v1139
        %v1141 = vpop.f32.mrf.mxu0
        %v1142 = vadd.f32 0.0, %v1141
        %1143 = vmatprep.mubr.f32.mxu0 0.0
        %1144 = vmatmul.mubr.f32.gmra.mxu0 %v702
        %v1145 = vpop.f32.mrf.mxu0
        %v1146 = vadd.f32 0.0, %v1145
        %v1147 = vpop.f32.mrf.mxu0
        %v1148 = vadd.f32 0.0, %v1147
        %1149 = vmatprep.mubr.f32.mxu0 0.0
        %1150 = vmatmul.mubr.f32.gmra.mxu0 %v703
        %v1151 = vpop.f32.mrf.mxu0
        %v1152 = vadd.f32 0.0, %v1151
        %v1153 = vpop.f32.mrf.mxu0
        %v1154 = vadd.f32 0.0, %v1153
        %1155 = vdwg.mxu0
        %v1156 = vmul.f32 %v771, %v688
        %v1157 = vmul.f32 %v773, %v689
        %v1158 = vmul.f32 %v884, %v690
        %v1159 = vmul.f32 %v886, %v691
        %v1160 = vmul.f32 %v997, %v692
        %v1161 = vmul.f32 %v999, %v693
        %v1162 = vmul.f32 %v1110, %v694
        %v1163 = vmul.f32 %v1112, %v695
        %v1164 = vmul.f32 %v777, %v688
        %v1165 = vmul.f32 %v779, %v689
        %v1166 = vmul.f32 %v890, %v690
        %v1167 = vmul.f32 %v892, %v691
        %v1168 = vmul.f32 %v1003, %v692
        %v1169 = vmul.f32 %v1005, %v693
        %v1170 = vmul.f32 %v1116, %v694
        %v1171 = vmul.f32 %v1118, %v695
        %v1172 = vmul.f32 %v783, %v688
        %v1173 = vmul.f32 %v785, %v689
        %v1174 = vmul.f32 %v896, %v690
        %v1175 = vmul.f32 %v898, %v691
        %v1176 = vmul.f32 %v1009, %v692
        %v1177 = vmul.f32 %v1011, %v693
        %v1178 = vmul.f32 %v1122, %v694
        %v1179 = vmul.f32 %v1124, %v695
        %v1180 = vmul.f32 %v789, %v688
        %v1181 = vmul.f32 %v791, %v689
        %v1182 = vmul.f32 %v902, %v690
        %v1183 = vmul.f32 %v904, %v691
        %v1184 = vmul.f32 %v1015, %v692
        %v1185 = vmul.f32 %v1017, %v693
        %v1186 = vmul.f32 %v1128, %v694
        %v1187 = vmul.f32 %v1130, %v695
        %v1188 = vmul.f32 %v795, %v688
        %v1189 = vmul.f32 %v797, %v689
        %v1190 = vmul.f32 %v908, %v690
        %v1191 = vmul.f32 %v910, %v691
        %v1192 = vmul.f32 %v1021, %v692
        %v1193 = vmul.f32 %v1023, %v693
        %v1194 = vmul.f32 %v1134, %v694
        %v1195 = vmul.f32 %v1136, %v695
        %v1196 = vmul.f32 %v801, %v688
        %v1197 = vmul.f32 %v803, %v689
        %v1198 = vmul.f32 %v914, %v690
        %v1199 = vmul.f32 %v916, %v691
        %v1200 = vmul.f32 %v1027, %v692
        %v1201 = vmul.f32 %v1029, %v693
        %v1202 = vmul.f32 %v1140, %v694
        %v1203 = vmul.f32 %v1142, %v695
        %v1204 = vmul.f32 %v807, %v688
        %v1205 = vmul.f32 %v809, %v689
        %v1206 = vmul.f32 %v920, %v690
        %v1207 = vmul.f32 %v922, %v691
        %v1208 = vmul.f32 %v1033, %v692
        %v1209 = vmul.f32 %v1035, %v693
        %v1210 = vmul.f32 %v1146, %v694
        %v1211 = vmul.f32 %v1148, %v695
        %v1212 = vmul.f32 %v813, %v688
        %v1213 = vmul.f32 %v815, %v689
        %v1214 = vmul.f32 %v926, %v690
        %v1215 = vmul.f32 %v928, %v691
        %v1216 = vmul.f32 %v1039, %v692
        %v1217 = vmul.f32 %v1041, %v693
        %v1218 = vmul.f32 %v1152, %v694
        %v1219 = vmul.f32 %v1154, %v695
        %v1220 = vmax.f32 %v1156, %v1164
        %v1221 = vmax.f32 %v1220, %v1172
        %v1222 = vmax.f32 %v1221, %v1180
        %v1223 = vmax.f32 %v1222, %v1188
        %v1224 = vmax.f32 %v1223, %v1196
        %v1225 = vmax.f32 %v1224, %v1204
        %v1226 = vmax.f32 %v1225, %v1212
        %v1227 = vrot.slane %v1226, 4
        %v1228 = vmax.f32 %v1226, %v1227
        %v1229 = vrot.slane %v1228, 2
        %v1230 = vmax.f32 %v1228, %v1229
        %v1231 = vrot.slane %v1230, 1
        %v1232 = vmax.f32 %v1230, %v1231
        %v1233 = vmax.f32 %v1157, %v1165
        %v1234 = vmax.f32 %v1233, %v1173
        %v1235 = vmax.f32 %v1234, %v1181
        %v1236 = vmax.f32 %v1235, %v1189
        %v1237 = vmax.f32 %v1236, %v1197
        %v1238 = vmax.f32 %v1237, %v1205
        %v1239 = vmax.f32 %v1238, %v1213
        %v1240 = vrot.slane %v1239, 4
        %v1241 = vmax.f32 %v1239, %v1240
        %v1242 = vrot.slane %v1241, 2
        %v1243 = vmax.f32 %v1241, %v1242
        %v1244 = vrot.slane %v1243, 1
        %v1245 = vmax.f32 %v1243, %v1244
        %v1246 = vmax.f32 %v1158, %v1166
        %v1247 = vmax.f32 %v1246, %v1174
        %v1248 = vmax.f32 %v1247, %v1182
        %v1249 = vmax.f32 %v1248, %v1190
        %v1250 = vmax.f32 %v1249, %v1198
        %v1251 = vmax.f32 %v1250, %v1206
        %v1252 = vmax.f32 %v1251, %v1214
        %v1253 = vrot.slane %v1252, 4
        %v1254 = vmax.f32 %v1252, %v1253
        %v1255 = vrot.slane %v1254, 2
        %v1256 = vmax.f32 %v1254, %v1255
        %v1257 = vrot.slane %v1256, 1
        %v1258 = vmax.f32 %v1256, %v1257
        %v1259 = vmax.f32 %v1159, %v1167
        %v1260 = vmax.f32 %v1259, %v1175
        %v1261 = vmax.f32 %v1260, %v1183
        %v1262 = vmax.f32 %v1261, %v1191
        %v1263 = vmax.f32 %v1262, %v1199
        %v1264 = vmax.f32 %v1263, %v1207
        %v1265 = vmax.f32 %v1264, %v1215
        %v1266 = vrot.slane %v1265, 4
        %v1267 = vmax.f32 %v1265, %v1266
        %v1268 = vrot.slane %v1267, 2
        %v1269 = vmax.f32 %v1267, %v1268
        %v1270 = vrot.slane %v1269, 1
        %v1271 = vmax.f32 %v1269, %v1270
        %v1272 = vmax.f32 %v1160, %v1168
        %v1273 = vmax.f32 %v1272, %v1176
        %v1274 = vmax.f32 %v1273, %v1184
        %v1275 = vmax.f32 %v1274, %v1192
        %v1276 = vmax.f32 %v1275, %v1200
        %v1277 = vmax.f32 %v1276, %v1208
        %v1278 = vmax.f32 %v1277, %v1216
        %v1279 = vrot.slane %v1278, 4
        %v1280 = vmax.f32 %v1278, %v1279
        %v1281 = vrot.slane %v1280, 2
        %v1282 = vmax.f32 %v1280, %v1281
        %v1283 = vrot.slane %v1282, 1
        %v1284 = vmax.f32 %v1282, %v1283
        %v1285 = vmax.f32 %v1161, %v1169
        %v1286 = vmax.f32 %v1285, %v1177
        %v1287 = vmax.f32 %v1286, %v1185
        %v1288 = vmax.f32 %v1287, %v1193
        %v1289 = vmax.f32 %v1288, %v1201
        %v1290 = vmax.f32 %v1289, %v1209
        %v1291 = vmax.f32 %v1290, %v1217
        %v1292 = vrot.slane %v1291, 4
        %v1293 = vmax.f32 %v1291, %v1292
        %v1294 = vrot.slane %v1293, 2
        %v1295 = vmax.f32 %v1293, %v1294
        %v1296 = vrot.slane %v1295, 1
        %v1297 = vmax.f32 %v1295, %v1296
        %v1298 = vmax.f32 %v1162, %v1170
        %v1299 = vmax.f32 %v1298, %v1178
        %v1300 = vmax.f32 %v1299, %v1186
        %v1301 = vmax.f32 %v1300, %v1194
        %v1302 = vmax.f32 %v1301, %v1202
        %v1303 = vmax.f32 %v1302, %v1210
        %v1304 = vmax.f32 %v1303, %v1218
        %v1305 = vrot.slane %v1304, 4
        %v1306 = vmax.f32 %v1304, %v1305
        %v1307 = vrot.slane %v1306, 2
        %v1308 = vmax.f32 %v1306, %v1307
        %v1309 = vrot.slane %v1308, 1
        %v1310 = vmax.f32 %v1308, %v1309
        %v1311 = vmax.f32 %v1163, %v1171
        %v1312 = vmax.f32 %v1311, %v1179
        %v1313 = vmax.f32 %v1312, %v1187
        %v1314 = vmax.f32 %v1313, %v1195
        %v1315 = vmax.f32 %v1314, %v1203
        %v1316 = vmax.f32 %v1315, %v1211
        %v1317 = vmax.f32 %v1316, %v1219
        %v1318 = vrot.slane %v1317, 4
        %v1319 = vmax.f32 %v1317, %v1318
        %v1320 = vrot.slane %v1319, 2
        %v1321 = vmax.f32 %v1319, %v1320
        %v1322 = vrot.slane %v1321, 1
        %v1323 = vmax.f32 %v1321, %v1322
        %v1324 = vsub.f32 %v1156, %v1232
        %v1325 = vsub.f32 %v1157, %v1245
        %v1326 = vsub.f32 %v1158, %v1258
        %v1327 = vsub.f32 %v1159, %v1271
        %v1328 = vsub.f32 %v1160, %v1284
        %v1329 = vsub.f32 %v1161, %v1297
        %v1330 = vsub.f32 %v1162, %v1310
        %v1331 = vsub.f32 %v1163, %v1323
        %v1332 = vsub.f32 %v1164, %v1232
        %v1333 = vsub.f32 %v1165, %v1245
        %v1334 = vsub.f32 %v1166, %v1258
        %v1335 = vsub.f32 %v1167, %v1271
        %v1336 = vsub.f32 %v1168, %v1284
        %v1337 = vsub.f32 %v1169, %v1297
        %v1338 = vsub.f32 %v1170, %v1310
        %v1339 = vsub.f32 %v1171, %v1323
        %v1340 = vsub.f32 %v1172, %v1232
        %v1341 = vsub.f32 %v1173, %v1245
        %v1342 = vsub.f32 %v1174, %v1258
        %v1343 = vsub.f32 %v1175, %v1271
        %v1344 = vsub.f32 %v1176, %v1284
        %v1345 = vsub.f32 %v1177, %v1297
        %v1346 = vsub.f32 %v1178, %v1310
        %v1347 = vsub.f32 %v1179, %v1323
        %v1348 = vsub.f32 %v1180, %v1232
        %v1349 = vsub.f32 %v1181, %v1245
        %v1350 = vsub.f32 %v1182, %v1258
        %v1351 = vsub.f32 %v1183, %v1271
        %v1352 = vsub.f32 %v1184, %v1284
        %v1353 = vsub.f32 %v1185, %v1297
        %v1354 = vsub.f32 %v1186, %v1310
        %v1355 = vsub.f32 %v1187, %v1323
        %v1356 = vsub.f32 %v1188, %v1232
        %v1357 = vsub.f32 %v1189, %v1245
        %v1358 = vsub.f32 %v1190, %v1258
        %v1359 = vsub.f32 %v1191, %v1271
        %v1360 = vsub.f32 %v1192, %v1284
        %v1361 = vsub.f32 %v1193, %v1297
        %v1362 = vsub.f32 %v1194, %v1310
        %v1363 = vsub.f32 %v1195, %v1323
        %v1364 = vsub.f32 %v1196, %v1232
        %v1365 = vsub.f32 %v1197, %v1245
        %v1366 = vsub.f32 %v1198, %v1258
        %v1367 = vsub.f32 %v1199, %v1271
        %v1368 = vsub.f32 %v1200, %v1284
        %v1369 = vsub.f32 %v1201, %v1297
        %v1370 = vsub.f32 %v1202, %v1310
        %v1371 = vsub.f32 %v1203, %v1323
        %v1372 = vsub.f32 %v1204, %v1232
        %v1373 = vsub.f32 %v1205, %v1245
        %v1374 = vsub.f32 %v1206, %v1258
        %v1375 = vsub.f32 %v1207, %v1271
        %v1376 = vsub.f32 %v1208, %v1284
        %v1377 = vsub.f32 %v1209, %v1297
        %v1378 = vsub.f32 %v1210, %v1310
        %v1379 = vsub.f32 %v1211, %v1323
        %v1380 = vsub.f32 %v1212, %v1232
        %v1381 = vsub.f32 %v1213, %v1245
        %v1382 = vsub.f32 %v1214, %v1258
        %v1383 = vsub.f32 %v1215, %v1271
        %v1384 = vsub.f32 %v1216, %v1284
        %v1385 = vsub.f32 %v1217, %v1297
        %v1386 = vsub.f32 %v1218, %v1310
        %v1387 = vsub.f32 %v1219, %v1323
        %v1388 = vmul.f32 %v1324, 1.442695
        %v1389 = vpow.pop %v1388
        %v1390 = vmul.f32 %v1325, 1.442695
        %v1391 = vpow.pop %v1390
        %v1392 = vmul.f32 %v1326, 1.442695
        %v1393 = vpow.pop %v1392
        %v1394 = vmul.f32 %v1327, 1.442695
        %v1395 = vpow.pop %v1394
        %v1396 = vmul.f32 %v1328, 1.442695
        %v1397 = vpow.pop %v1396
        %v1398 = vmul.f32 %v1329, 1.442695
        %v1399 = vpow.pop %v1398
        %v1400 = vmul.f32 %v1330, 1.442695
        %v1401 = vpow.pop %v1400
        %v1402 = vmul.f32 %v1331, 1.442695
        %v1403 = vpow.pop %v1402
        %v1404 = vmul.f32 %v1332, 1.442695
        %v1405 = vpow.pop %v1404
        %v1406 = vmul.f32 %v1333, 1.442695
        %v1407 = vpow.pop %v1406
        %v1408 = vmul.f32 %v1334, 1.442695
        %v1409 = vpow.pop %v1408
        %v1410 = vmul.f32 %v1335, 1.442695
        %v1411 = vpow.pop %v1410
        %v1412 = vmul.f32 %v1336, 1.442695
        %v1413 = vpow.pop %v1412
        %v1414 = vmul.f32 %v1337, 1.442695
        %v1415 = vpow.pop %v1414
        %v1416 = vmul.f32 %v1338, 1.442695
        %v1417 = vpow.pop %v1416
        %v1418 = vmul.f32 %v1339, 1.442695
        %v1419 = vpow.pop %v1418
        %v1420 = vmul.f32 %v1340, 1.442695
        %v1421 = vpow.pop %v1420
        %v1422 = vmul.f32 %v1341, 1.442695
        %v1423 = vpow.pop %v1422
        %v1424 = vmul.f32 %v1342, 1.442695
        %v1425 = vpow.pop %v1424
        %v1426 = vmul.f32 %v1343, 1.442695
        %v1427 = vpow.pop %v1426
        %v1428 = vmul.f32 %v1344, 1.442695
        %v1429 = vpow.pop %v1428
        %v1430 = vmul.f32 %v1345, 1.442695
        %v1431 = vpow.pop %v1430
        %v1432 = vmul.f32 %v1346, 1.442695
        %v1433 = vpow.pop %v1432
        %v1434 = vmul.f32 %v1347, 1.442695
        %v1435 = vpow.pop %v1434
        %v1436 = vmul.f32 %v1348, 1.442695
        %v1437 = vpow.pop %v1436
        %v1438 = vmul.f32 %v1349, 1.442695
        %v1439 = vpow.pop %v1438
        %v1440 = vmul.f32 %v1350, 1.442695
        %v1441 = vpow.pop %v1440
        %v1442 = vmul.f32 %v1351, 1.442695
        %v1443 = vpow.pop %v1442
        %v1444 = vmul.f32 %v1352, 1.442695
        %v1445 = vpow.pop %v1444
        %v1446 = vmul.f32 %v1353, 1.442695
        %v1447 = vpow.pop %v1446
        %v1448 = vmul.f32 %v1354, 1.442695
        %v1449 = vpow.pop %v1448
        %v1450 = vmul.f32 %v1355, 1.442695
        %v1451 = vpow.pop %v1450
        %v1452 = vmul.f32 %v1356, 1.442695
        %v1453 = vpow.pop %v1452
        %v1454 = vmul.f32 %v1357, 1.442695
        %v1455 = vpow.pop %v1454
        %v1456 = vmul.f32 %v1358, 1.442695
        %v1457 = vpow.pop %v1456
        %v1458 = vmul.f32 %v1359, 1.442695
        %v1459 = vpow.pop %v1458
        %v1460 = vmul.f32 %v1360, 1.442695
        %v1461 = vpow.pop %v1460
        %v1462 = vmul.f32 %v1361, 1.442695
        %v1463 = vpow.pop %v1462
        %v1464 = vmul.f32 %v1362, 1.442695
        %v1465 = vpow.pop %v1464
        %v1466 = vmul.f32 %v1363, 1.442695
        %v1467 = vpow.pop %v1466
        %v1468 = vmul.f32 %v1364, 1.442695
        %v1469 = vpow.pop %v1468
        %v1470 = vmul.f32 %v1365, 1.442695
        %v1471 = vpow.pop %v1470
        %v1472 = vmul.f32 %v1366, 1.442695
        %v1473 = vpow.pop %v1472
        %v1474 = vmul.f32 %v1367, 1.442695
        %v1475 = vpow.pop %v1474
        %v1476 = vmul.f32 %v1368, 1.442695
        %v1477 = vpow.pop %v1476
        %v1478 = vmul.f32 %v1369, 1.442695
        %v1479 = vpow.pop %v1478
        %v1480 = vmul.f32 %v1370, 1.442695
        %v1481 = vpow.pop %v1480
        %v1482 = vmul.f32 %v1371, 1.442695
        %v1483 = vpow.pop %v1482
        %v1484 = vmul.f32 %v1372, 1.442695
        %v1485 = vpow.pop %v1484
        %v1486 = vmul.f32 %v1373, 1.442695
        %v1487 = vpow.pop %v1486
        %v1488 = vmul.f32 %v1374, 1.442695
        %v1489 = vpow.pop %v1488
        %v1490 = vmul.f32 %v1375, 1.442695
        %v1491 = vpow.pop %v1490
        %v1492 = vmul.f32 %v1376, 1.442695
        %v1493 = vpow.pop %v1492
        %v1494 = vmul.f32 %v1377, 1.442695
        %v1495 = vpow.pop %v1494
        %v1496 = vmul.f32 %v1378, 1.442695
        %v1497 = vpow.pop %v1496
        %v1498 = vmul.f32 %v1379, 1.442695
        %v1499 = vpow.pop %v1498
        %v1500 = vmul.f32 %v1380, 1.442695
        %v1501 = vpow.pop %v1500
        %v1502 = vmul.f32 %v1381, 1.442695
        %v1503 = vpow.pop %v1502
        %v1504 = vmul.f32 %v1382, 1.442695
        %v1505 = vpow.pop %v1504
        %v1506 = vmul.f32 %v1383, 1.442695
        %v1507 = vpow.pop %v1506
        %v1508 = vmul.f32 %v1384, 1.442695
        %v1509 = vpow.pop %v1508
        %v1510 = vmul.f32 %v1385, 1.442695
        %v1511 = vpow.pop %v1510
        %v1512 = vmul.f32 %v1386, 1.442695
        %v1513 = vpow.pop %v1512
        %v1514 = vmul.f32 %v1387, 1.442695
        %v1515 = vpow.pop %v1514
        %v1516 = vadd.f32 %v1389, %v1405
        %v1517 = vadd.f32 %v1516, %v1421
        %v1518 = vadd.f32 %v1517, %v1437
        %v1519 = vadd.f32 %v1518, %v1453
        %v1520 = vadd.f32 %v1519, %v1469
        %v1521 = vadd.f32 %v1520, %v1485
        %v1522 = vadd.f32 %v1521, %v1501
        %v1523 = vrot.slane %v1522, 4
        %v1524 = vadd.f32 %v1522, %v1523
        %v1525 = vrot.slane %v1524, 2
        %v1526 = vadd.f32 %v1524, %v1525
        %v1527 = vrot.slane %v1526, 1
        %v1528 = vadd.f32 %v1526, %v1527
        %v1529 = vadd.f32 %v1391, %v1407
        %v1530 = vadd.f32 %v1529, %v1423
        %v1531 = vadd.f32 %v1530, %v1439
        %v1532 = vadd.f32 %v1531, %v1455
        %v1533 = vadd.f32 %v1532, %v1471
        %v1534 = vadd.f32 %v1533, %v1487
        %v1535 = vadd.f32 %v1534, %v1503
        %v1536 = vrot.slane %v1535, 4
        %v1537 = vadd.f32 %v1535, %v1536
        %v1538 = vrot.slane %v1537, 2
        %v1539 = vadd.f32 %v1537, %v1538
        %v1540 = vrot.slane %v1539, 1
        %v1541 = vadd.f32 %v1539, %v1540
        %v1542 = vadd.f32 %v1393, %v1409
        %v1543 = vadd.f32 %v1542, %v1425
        %v1544 = vadd.f32 %v1543, %v1441
        %v1545 = vadd.f32 %v1544, %v1457
        %v1546 = vadd.f32 %v1545, %v1473
        %v1547 = vadd.f32 %v1546, %v1489
        %v1548 = vadd.f32 %v1547, %v1505
        %v1549 = vrot.slane %v1548, 4
        %v1550 = vadd.f32 %v1548, %v1549
        %v1551 = vrot.slane %v1550, 2
        %v1552 = vadd.f32 %v1550, %v1551
        %v1553 = vrot.slane %v1552, 1
        %v1554 = vadd.f32 %v1552, %v1553
        %v1555 = vadd.f32 %v1395, %v1411
        %v1556 = vadd.f32 %v1555, %v1427
        %v1557 = vadd.f32 %v1556, %v1443
        %v1558 = vadd.f32 %v1557, %v1459
        %v1559 = vadd.f32 %v1558, %v1475
        %v1560 = vadd.f32 %v1559, %v1491
        %v1561 = vadd.f32 %v1560, %v1507
        %v1562 = vrot.slane %v1561, 4
        %v1563 = vadd.f32 %v1561, %v1562
        %v1564 = vrot.slane %v1563, 2
        %v1565 = vadd.f32 %v1563, %v1564
        %v1566 = vrot.slane %v1565, 1
        %v1567 = vadd.f32 %v1565, %v1566
        %v1568 = vadd.f32 %v1397, %v1413
        %v1569 = vadd.f32 %v1568, %v1429
        %v1570 = vadd.f32 %v1569, %v1445
        %v1571 = vadd.f32 %v1570, %v1461
        %v1572 = vadd.f32 %v1571, %v1477
        %v1573 = vadd.f32 %v1572, %v1493
        %v1574 = vadd.f32 %v1573, %v1509
        %v1575 = vrot.slane %v1574, 4
        %v1576 = vadd.f32 %v1574, %v1575
        %v1577 = vrot.slane %v1576, 2
        %v1578 = vadd.f32 %v1576, %v1577
        %v1579 = vrot.slane %v1578, 1
        %v1580 = vadd.f32 %v1578, %v1579
        %v1581 = vadd.f32 %v1399, %v1415
        %v1582 = vadd.f32 %v1581, %v1431
        %v1583 = vadd.f32 %v1582, %v1447
        %v1584 = vadd.f32 %v1583, %v1463
        %v1585 = vadd.f32 %v1584, %v1479
        %v1586 = vadd.f32 %v1585, %v1495
        %v1587 = vadd.f32 %v1586, %v1511
        %v1588 = vrot.slane %v1587, 4
        %v1589 = vadd.f32 %v1587, %v1588
        %v1590 = vrot.slane %v1589, 2
        %v1591 = vadd.f32 %v1589, %v1590
        %v1592 = vrot.slane %v1591, 1
        %v1593 = vadd.f32 %v1591, %v1592
        %v1594 = vadd.f32 %v1401, %v1417
        %v1595 = vadd.f32 %v1594, %v1433
        %v1596 = vadd.f32 %v1595, %v1449
        %v1597 = vadd.f32 %v1596, %v1465
        %v1598 = vadd.f32 %v1597, %v1481
        %v1599 = vadd.f32 %v1598, %v1497
        %v1600 = vadd.f32 %v1599, %v1513
        %v1601 = vrot.slane %v1600, 4
        %v1602 = vadd.f32 %v1600, %v1601
        %v1603 = vrot.slane %v1602, 2
        %v1604 = vadd.f32 %v1602, %v1603
        %v1605 = vrot.slane %v1604, 1
        %v1606 = vadd.f32 %v1604, %v1605
        %v1607 = vadd.f32 %v1403, %v1419
        %v1608 = vadd.f32 %v1607, %v1435
        %v1609 = vadd.f32 %v1608, %v1451
        %v1610 = vadd.f32 %v1609, %v1467
        %v1611 = vadd.f32 %v1610, %v1483
        %v1612 = vadd.f32 %v1611, %v1499
        %v1613 = vadd.f32 %v1612, %v1515
        %v1614 = vrot.slane %v1613, 4
        %v1615 = vadd.f32 %v1613, %v1614
        %v1616 = vrot.slane %v1615, 2
        %v1617 = vadd.f32 %v1615, %v1616
        %v1618 = vrot.slane %v1617, 1
        %v1619 = vadd.f32 %v1617, %v1618
        %v1620 = vrcp.pop %v1528
        %v1621 = vrcp.pop %v1541
        %v1622 = vrcp.pop %v1554
        %v1623 = vrcp.pop %v1567
        %v1624 = vrcp.pop %v1580
        %v1625 = vrcp.pop %v1593
        %v1626 = vrcp.pop %v1606
        %v1627 = vrcp.pop %v1619
        %v1628 = vmul.f32 %v1389, %v1620
        %v1629 = vmul.f32 %v1391, %v1621
        %v1630 = vmul.f32 %v1393, %v1622
        %v1631 = vmul.f32 %v1395, %v1623
        %v1632 = vmul.f32 %v1397, %v1624
        %v1633 = vmul.f32 %v1399, %v1625
        %v1634 = vmul.f32 %v1401, %v1626
        %v1635 = vmul.f32 %v1403, %v1627
        %v1636 = vmul.f32 %v1405, %v1620
        %v1637 = vmul.f32 %v1407, %v1621
        %v1638 = vmul.f32 %v1409, %v1622
        %v1639 = vmul.f32 %v1411, %v1623
        %v1640 = vmul.f32 %v1413, %v1624
        %v1641 = vmul.f32 %v1415, %v1625
        %v1642 = vmul.f32 %v1417, %v1626
        %v1643 = vmul.f32 %v1419, %v1627
        %v1644 = vmul.f32 %v1421, %v1620
        %v1645 = vmul.f32 %v1423, %v1621
        %v1646 = vmul.f32 %v1425, %v1622
        %v1647 = vmul.f32 %v1427, %v1623
        %v1648 = vmul.f32 %v1429, %v1624
        %v1649 = vmul.f32 %v1431, %v1625
        %v1650 = vmul.f32 %v1433, %v1626
        %v1651 = vmul.f32 %v1435, %v1627
        %v1652 = vmul.f32 %v1437, %v1620
        %v1653 = vmul.f32 %v1439, %v1621
        %v1654 = vmul.f32 %v1441, %v1622
        %v1655 = vmul.f32 %v1443, %v1623
        %v1656 = vmul.f32 %v1445, %v1624
        %v1657 = vmul.f32 %v1447, %v1625
        %v1658 = vmul.f32 %v1449, %v1626
        %v1659 = vmul.f32 %v1451, %v1627
        %v1660 = vmul.f32 %v1453, %v1620
        %v1661 = vmul.f32 %v1455, %v1621
        %v1662 = vmul.f32 %v1457, %v1622
        %v1663 = vmul.f32 %v1459, %v1623
        %v1664 = vmul.f32 %v1461, %v1624
        %v1665 = vmul.f32 %v1463, %v1625
        %v1666 = vmul.f32 %v1465, %v1626
        %v1667 = vmul.f32 %v1467, %v1627
        %v1668 = vmul.f32 %v1469, %v1620
        %v1669 = vmul.f32 %v1471, %v1621
        %v1670 = vmul.f32 %v1473, %v1622
        %v1671 = vmul.f32 %v1475, %v1623
        %v1672 = vmul.f32 %v1477, %v1624
        %v1673 = vmul.f32 %v1479, %v1625
        %v1674 = vmul.f32 %v1481, %v1626
        %v1675 = vmul.f32 %v1483, %v1627
        %v1676 = vmul.f32 %v1485, %v1620
        %v1677 = vmul.f32 %v1487, %v1621
        %v1678 = vmul.f32 %v1489, %v1622
        %v1679 = vmul.f32 %v1491, %v1623
        %v1680 = vmul.f32 %v1493, %v1624
        %v1681 = vmul.f32 %v1495, %v1625
        %v1682 = vmul.f32 %v1497, %v1626
        %v1683 = vmul.f32 %v1499, %v1627
        %v1684 = vmul.f32 %v1501, %v1620
        %v1685 = vmul.f32 %v1503, %v1621
        %v1686 = vmul.f32 %v1505, %v1622
        %v1687 = vmul.f32 %v1507, %v1623
        %v1688 = vmul.f32 %v1509, %v1624
        %v1689 = vmul.f32 %v1511, %v1625
        %v1690 = vmul.f32 %v1513, %v1626
        %v1691 = vmul.f32 %v1515, %v1627
        %v1692 = vld [vmem:[#allocation3] sm:$0xff]
        %v1693 = vld [vmem:[#allocation3 + $0x8] sm:$0xff]
        %v1694 = vld [vmem:[#allocation3 + $0x10] sm:$0xff]
        %v1695 = vld [vmem:[#allocation3 + $0x18] sm:$0xff]
        %v1696 = vld [vmem:[#allocation3 + $0x20] sm:$0xff]
        %v1697 = vld [vmem:[#allocation3 + $0x28] sm:$0xff]
        %v1698 = vld [vmem:[#allocation3 + $0x30] sm:$0xff]
        %v1699 = vld [vmem:[#allocation3 + $0x38] sm:$0xff]
        %v1700 = vadd.f32 %v1628, %v1629
        %v1701 = vadd.f32 %v1700, %v1630
        %v1702 = vadd.f32 %v1701, %v1631
        %v1703 = vadd.f32 %v1702, %v1632
        %v1704 = vadd.f32 %v1703, %v1633
        %v1705 = vadd.f32 %v1704, %v1634
        %v1706 = vadd.f32 %v1705, %v1635
        %1707 = vadd.xlane.f32.xlu0 %v1706
        %v1708 = vpop.xlane.xlu0 %1707
        %v1709 = vadd.f32 %v1636, %v1637
        %v1710 = vadd.f32 %v1709, %v1638
        %v1711 = vadd.f32 %v1710, %v1639
        %v1712 = vadd.f32 %v1711, %v1640
        %v1713 = vadd.f32 %v1712, %v1641
        %v1714 = vadd.f32 %v1713, %v1642
        %v1715 = vadd.f32 %v1714, %v1643
        %1716 = vadd.xlane.f32.xlu0 %v1715
        %v1717 = vpop.xlane.xlu0 %1716
        %v1718 = vadd.f32 %v1644, %v1645
        %v1719 = vadd.f32 %v1718, %v1646
        %v1720 = vadd.f32 %v1719, %v1647
        %v1721 = vadd.f32 %v1720, %v1648
        %v1722 = vadd.f32 %v1721, %v1649
        %v1723 = vadd.f32 %v1722, %v1650
        %v1724 = vadd.f32 %v1723, %v1651
        %1725 = vadd.xlane.f32.xlu0 %v1724
        %v1726 = vpop.xlane.xlu0 %1725
        %v1727 = vadd.f32 %v1652, %v1653
        %v1728 = vadd.f32 %v1727, %v1654
        %v1729 = vadd.f32 %v1728, %v1655
        %v1730 = vadd.f32 %v1729, %v1656
        %v1731 = vadd.f32 %v1730, %v1657
        %v1732 = vadd.f32 %v1731, %v1658
        %v1733 = vadd.f32 %v1732, %v1659
        %1734 = vadd.xlane.f32.xlu0 %v1733
        %v1735 = vpop.xlane.xlu0 %1734
        %v1736 = vadd.f32 %v1660, %v1661
        %v1737 = vadd.f32 %v1736, %v1662
        %v1738 = vadd.f32 %v1737, %v1663
        %v1739 = vadd.f32 %v1738, %v1664
        %v1740 = vadd.f32 %v1739, %v1665
        %v1741 = vadd.f32 %v1740, %v1666
        %v1742 = vadd.f32 %v1741, %v1667
        %1743 = vadd.xlane.f32.xlu0 %v1742
        %v1744 = vpop.xlane.xlu0 %1743
        %v1745 = vadd.f32 %v1668, %v1669
        %v1746 = vadd.f32 %v1745, %v1670
        %v1747 = vadd.f32 %v1746, %v1671
        %v1748 = vadd.f32 %v1747, %v1672
        %v1749 = vadd.f32 %v1748, %v1673
        %v1750 = vadd.f32 %v1749, %v1674
        %v1751 = vadd.f32 %v1750, %v1675
        %1752 = vadd.xlane.f32.xlu0 %v1751
        %v1753 = vpop.xlane.xlu0 %1752
        %v1754 = vadd.f32 %v1676, %v1677
        %v1755 = vadd.f32 %v1754, %v1678
        %v1756 = vadd.f32 %v1755, %v1679
        %v1757 = vadd.f32 %v1756, %v1680
        %v1758 = vadd.f32 %v1757, %v1681
        %v1759 = vadd.f32 %v1758, %v1682
        %v1760 = vadd.f32 %v1759, %v1683
        %1761 = vadd.xlane.f32.xlu0 %v1760
        %v1762 = vpop.xlane.xlu0 %1761
        %v1763 = vadd.f32 %v1684, %v1685
        %v1764 = vadd.f32 %v1763, %v1686
        %v1765 = vadd.f32 %v1764, %v1687
        %v1766 = vadd.f32 %v1765, %v1688
        %v1767 = vadd.f32 %v1766, %v1689
        %v1768 = vadd.f32 %v1767, %v1690
        %v1769 = vadd.f32 %v1768, %v1691
        %1770 = vadd.xlane.f32.xlu0 %v1769
        %v1771 = vpop.xlane.xlu0 %1770
        %v1772 = vadd.f32 %v1692, %v1708
        %v1773 = vadd.f32 %v1693, %v1717
        %v1774 = vadd.f32 %v1694, %v1726
        %v1775 = vadd.f32 %v1695, %v1735
        %v1776 = vadd.f32 %v1696, %v1744
        %v1777 = vadd.f32 %v1697, %v1753
        %v1778 = vadd.f32 %v1698, %v1762
        %v1779 = vadd.f32 %v1699, %v1771
        %vm1780 = vcmask 7168
        %1781 = vst.msk [vmem:[#allocation3] sm:$0xff] %vm1780, %v1772
        %1782 = vst.msk [vmem:[#allocation3 + $0x8] sm:$0xff] %vm1780, %v1773
        %1783 = vst.msk [vmem:[#allocation3 + $0x10] sm:$0xff] %vm1780, %v1774
        %1784 = vst.msk [vmem:[#allocation3 + $0x18] sm:$0xff] %vm1780, %v1775
        %1785 = vst.msk [vmem:[#allocation3 + $0x20] sm:$0xff] %vm1780, %v1776
        %1786 = vst.msk [vmem:[#allocation3 + $0x28] sm:$0xff] %vm1780, %v1777
        %1787 = vst.msk [vmem:[#allocation3 + $0x30] sm:$0xff] %vm1780, %v1778
        %1788 = vst.msk [vmem:[#allocation3 + $0x38] sm:$0xff] %vm1780, %v1779
        %v1789 = vmul.f32 %v1628, %v688
        %v1790 = vmul.f32 %v1629, %v689
        %v1791 = vmul.f32 %v1630, %v690
        %v1792 = vmul.f32 %v1631, %v691
        %v1793 = vmul.f32 %v1632, %v692
        %v1794 = vmul.f32 %v1633, %v693
        %v1795 = vmul.f32 %v1634, %v694
        %v1796 = vmul.f32 %v1635, %v695
        %v1797 = vmul.f32 %v1636, %v688
        %v1798 = vmul.f32 %v1637, %v689
        %v1799 = vmul.f32 %v1638, %v690
        %v1800 = vmul.f32 %v1639, %v691
        %v1801 = vmul.f32 %v1640, %v692
        %v1802 = vmul.f32 %v1641, %v693
        %v1803 = vmul.f32 %v1642, %v694
        %v1804 = vmul.f32 %v1643, %v695
        %v1805 = vmul.f32 %v1644, %v688
        %v1806 = vmul.f32 %v1645, %v689
        %v1807 = vmul.f32 %v1646, %v690
        %v1808 = vmul.f32 %v1647, %v691
        %v1809 = vmul.f32 %v1648, %v692
        %v1810 = vmul.f32 %v1649, %v693
        %v1811 = vmul.f32 %v1650, %v694
        %v1812 = vmul.f32 %v1651, %v695
        %v1813 = vmul.f32 %v1652, %v688
        %v1814 = vmul.f32 %v1653, %v689
        %v1815 = vmul.f32 %v1654, %v690
        %v1816 = vmul.f32 %v1655, %v691
        %v1817 = vmul.f32 %v1656, %v692
        %v1818 = vmul.f32 %v1657, %v693
        %v1819 = vmul.f32 %v1658, %v694
        %v1820 = vmul.f32 %v1659, %v695
        %v1821 = vmul.f32 %v1660, %v688
        %v1822 = vmul.f32 %v1661, %v689
        %v1823 = vmul.f32 %v1662, %v690
        %v1824 = vmul.f32 %v1663, %v691
        %v1825 = vmul.f32 %v1664, %v692
        %v1826 = vmul.f32 %v1665, %v693
        %v1827 = vmul.f32 %v1666, %v694
        %v1828 = vmul.f32 %v1667, %v695
        %v1829 = vmul.f32 %v1668, %v688
        %v1830 = vmul.f32 %v1669, %v689
        %v1831 = vmul.f32 %v1670, %v690
        %v1832 = vmul.f32 %v1671, %v691
        %v1833 = vmul.f32 %v1672, %v692
        %v1834 = vmul.f32 %v1673, %v693
        %v1835 = vmul.f32 %v1674, %v694
        %v1836 = vmul.f32 %v1675, %v695
        %v1837 = vmul.f32 %v1676, %v688
        %v1838 = vmul.f32 %v1677, %v689
        %v1839 = vmul.f32 %v1678, %v690
        %v1840 = vmul.f32 %v1679, %v691
        %v1841 = vmul.f32 %v1680, %v692
        %v1842 = vmul.f32 %v1681, %v693
        %v1843 = vmul.f32 %v1682, %v694
        %v1844 = vmul.f32 %v1683, %v695
        %v1845 = vmul.f32 %v1684, %v688
        %v1846 = vmul.f32 %v1685, %v689
        %v1847 = vmul.f32 %v1686, %v690
        %v1848 = vmul.f32 %v1687, %v691
        %v1849 = vmul.f32 %v1688, %v692
        %v1850 = vmul.f32 %v1689, %v693
        %v1851 = vmul.f32 %v1690, %v694
        %v1852 = vmul.f32 %v1691, %v695
        %v1853 = vld [vmem:[#allocation2] sm:$0xff]
        %v1854 = vld [vmem:[#allocation2 + $0x8] sm:$0xff]
        %v1855 = vld [vmem:[#allocation2 + $0x10] sm:$0xff]
        %v1856 = vld [vmem:[#allocation2 + $0x18] sm:$0xff]
        %v1857 = vld [vmem:[#allocation2 + $0x20] sm:$0xff]
        %v1858 = vld [vmem:[#allocation2 + $0x28] sm:$0xff]
        %v1859 = vld [vmem:[#allocation2 + $0x30] sm:$0xff]
        %v1860 = vld [vmem:[#allocation2 + $0x38] sm:$0xff]
        %1861 = vmatprep.subr.mxu0 %v377
        %1862 = vmatpush1.xpose.msra.mxu0 %v376
        %1863 = vmatprep.subr.mxu0 %v369
        %1864 = vmatpush1.xpose.msra.mxu0 %v368
        %1865 = vmatprep.subr.mxu0 %v361
        %1866 = vmatpush1.xpose.msra.mxu0 %v360
        %1867 = vmatprep.subr.mxu0 %v353
        %1868 = vmatpush1.xpose.msra.mxu0 %v352
        %1869 = vmatprep.subr.mxu0 %v345
        %1870 = vmatpush1.xpose.msra.mxu0 %v344
        %1871 = vmatprep.subr.mxu0 %v337
        %1872 = vmatpush1.xpose.msra.mxu0 %v336
        %1873 = vmatprep.subr.mxu0 %v329
        %1874 = vmatpush1.xpose.msra.mxu0 %v328
        %1875 = vmatprep.subr.mxu0 %v321
        %1876 = vmatpush1.xpose.msra.mxu0 %v320
        %1877 = vmatprep.subr.mxu0 %v313
        %1878 = vmatpush1.xpose.msra.mxu0 %v312
        %1879 = vmatprep.subr.mxu0 %v305
        %1880 = vmatpush1.xpose.msra.mxu0 %v304
        %1881 = vmatprep.subr.mxu0 %v297
        %1882 = vmatpush1.xpose.msra.mxu0 %v296
        %1883 = vmatprep.subr.mxu0 %v289
        %1884 = vmatpush1.xpose.msra.mxu0 %v288
        %1885 = vmatprep.subr.mxu0 %v281
        %1886 = vmatpush1.xpose.msra.mxu0 %v280
        %1887 = vmatprep.subr.mxu0 %v273
        %1888 = vmatpush1.xpose.msra.mxu0 %v272
        %1889 = vmatprep.subr.mxu0 %v265
        %1890 = vmatpush1.xpose.msra.mxu0 %v264
        %1891 = vmatprep.subr.mxu0 %v257
        %1892 = vmatpush1.xpose.msra.mxu0 %v256
        %1893 = vmatprep.subr.mxu0 0.0
        %1894 = vmatpush2.xpose.msra.mxu0 0.0
        %1895 = vmatprep.subr.mxu0 0.0
        %1896 = vmatpush2.xpose.msra.mxu0 0.0
        %1897 = vmatprep.subr.mxu0 0.0
        %1898 = vmatpush2.xpose.msra.mxu0 0.0
        %1899 = vmatprep.subr.mxu0 0.0
        %1900 = vmatpush2.xpose.msra.mxu0 0.0
        %1901 = vmatprep.subr.mxu0 0.0
        %1902 = vmatpush2.xpose.msra.mxu0 0.0
        %1903 = vmatprep.subr.mxu0 0.0
        %1904 = vmatpush2.xpose.msra.mxu0 0.0
        %1905 = vmatprep.subr.mxu0 0.0
        %1906 = vmatpush2.xpose.msra.mxu0 0.0
        %1907 = vmatprep.subr.mxu0 0.0
        %1908 = vmatpush2.xpose.msra.mxu0 0.0
        %1909 = vmatprep.subr.mxu0 0.0
        %1910 = vmatpush2.xpose.msra.mxu0 0.0
        %1911 = vmatprep.subr.mxu0 0.0
        %1912 = vmatpush2.xpose.msra.mxu0 0.0
        %1913 = vmatprep.subr.mxu0 0.0
        %1914 = vmatpush2.xpose.msra.mxu0 0.0
        %1915 = vmatprep.subr.mxu0 0.0
        %1916 = vmatpush2.xpose.msra.mxu0 0.0
        %1917 = vmatprep.subr.mxu0 0.0
        %1918 = vmatpush2.xpose.msra.mxu0 0.0
        %1919 = vmatprep.subr.mxu0 0.0
        %1920 = vmatpush2.xpose.msra.mxu0 0.0
        %1921 = vmatprep.subr.mxu0 0.0
        %1922 = vmatpush2.xpose.msra.mxu0 0.0
        %1923 = vmatprep.subr.mxu0 0.0
        %1924 = vmatpush2.xpose.msra.mxu0 0.0
        %1925 = vmatprep.mubr.f32.mxu0 %v1790
        %1926 = vmatmul.mubr.f32.gmra.mxu0 %v1789
        %v1927 = vpop.f32.mrf.mxu0
        %v1928 = vadd.f32 0.0, %v1927
        %v1929 = vpop.f32.mrf.mxu0
        %1930 = vmatprep.mubr.f32.mxu0 %v1798
        %1931 = vmatmul.mubr.f32.gmra.mxu0 %v1797
        %v1932 = vpop.f32.mrf.mxu0
        %v1933 = vadd.f32 0.0, %v1932
        %v1934 = vpop.f32.mrf.mxu0
        %1935 = vmatprep.mubr.f32.mxu0 %v1806
        %1936 = vmatmul.mubr.f32.gmra.mxu0 %v1805
        %v1937 = vpop.f32.mrf.mxu0
        %v1938 = vadd.f32 0.0, %v1937
        %v1939 = vpop.f32.mrf.mxu0
        %1940 = vmatprep.mubr.f32.mxu0 %v1814
        %1941 = vmatmul.mubr.f32.gmra.mxu0 %v1813
        %v1942 = vpop.f32.mrf.mxu0
        %v1943 = vadd.f32 0.0, %v1942
        %v1944 = vpop.f32.mrf.mxu0
        %1945 = vmatprep.mubr.f32.mxu0 %v1822
        %1946 = vmatmul.mubr.f32.gmra.mxu0 %v1821
        %v1947 = vpop.f32.mrf.mxu0
        %v1948 = vadd.f32 0.0, %v1947
        %v1949 = vpop.f32.mrf.mxu0
        %1950 = vmatprep.mubr.f32.mxu0 %v1830
        %1951 = vmatmul.mubr.f32.gmra.mxu0 %v1829
        %v1952 = vpop.f32.mrf.mxu0
        %v1953 = vadd.f32 0.0, %v1952
        %v1954 = vpop.f32.mrf.mxu0
        %1955 = vmatprep.mubr.f32.mxu0 %v1838
        %1956 = vmatmul.mubr.f32.gmra.mxu0 %v1837
        %v1957 = vpop.f32.mrf.mxu0
        %v1958 = vadd.f32 0.0, %v1957
        %v1959 = vpop.f32.mrf.mxu0
        %1960 = vmatprep.mubr.f32.mxu0 %v1846
        %1961 = vmatmul.mubr.f32.gmra.mxu0 %v1845
        %v1962 = vpop.f32.mrf.mxu0
        %v1963 = vadd.f32 0.0, %v1962
        %v1964 = vpop.f32.mrf.mxu0
        %1965 = vdwg.mxu0
        %1966 = vmatprep.subr.mxu0 %v379
        %1967 = vmatpush1.xpose.msra.mxu0 %v378
        %1968 = vmatprep.subr.mxu0 %v371
        %1969 = vmatpush1.xpose.msra.mxu0 %v370
        %1970 = vmatprep.subr.mxu0 %v363
        %1971 = vmatpush1.xpose.msra.mxu0 %v362
        %1972 = vmatprep.subr.mxu0 %v355
        %1973 = vmatpush1.xpose.msra.mxu0 %v354
        %1974 = vmatprep.subr.mxu0 %v347
        %1975 = vmatpush1.xpose.msra.mxu0 %v346
        %1976 = vmatprep.subr.mxu0 %v339
        %1977 = vmatpush1.xpose.msra.mxu0 %v338
        %1978 = vmatprep.subr.mxu0 %v331
        %1979 = vmatpush1.xpose.msra.mxu0 %v330
        %1980 = vmatprep.subr.mxu0 %v323
        %1981 = vmatpush1.xpose.msra.mxu0 %v322
        %1982 = vmatprep.subr.mxu0 %v315
        %1983 = vmatpush1.xpose.msra.mxu0 %v314
        %1984 = vmatprep.subr.mxu0 %v307
        %1985 = vmatpush1.xpose.msra.mxu0 %v306
        %1986 = vmatprep.subr.mxu0 %v299
        %1987 = vmatpush1.xpose.msra.mxu0 %v298
        %1988 = vmatprep.subr.mxu0 %v291
        %1989 = vmatpush1.xpose.msra.mxu0 %v290
        %1990 = vmatprep.subr.mxu0 %v283
        %1991 = vmatpush1.xpose.msra.mxu0 %v282
        %1992 = vmatprep.subr.mxu0 %v275
        %1993 = vmatpush1.xpose.msra.mxu0 %v274
        %1994 = vmatprep.subr.mxu0 %v267
        %1995 = vmatpush1.xpose.msra.mxu0 %v266
        %1996 = vmatprep.subr.mxu0 %v259
        %1997 = vmatpush1.xpose.msra.mxu0 %v258
        %1998 = vmatprep.subr.mxu0 0.0
        %1999 = vmatpush2.xpose.msra.mxu0 0.0
        %2000 = vmatprep.subr.mxu0 0.0
        %2001 = vmatpush2.xpose.msra.mxu0 0.0
        %2002 = vmatprep.subr.mxu0 0.0
        %2003 = vmatpush2.xpose.msra.mxu0 0.0
        %2004 = vmatprep.subr.mxu0 0.0
        %2005 = vmatpush2.xpose.msra.mxu0 0.0
        %2006 = vmatprep.subr.mxu0 0.0
        %2007 = vmatpush2.xpose.msra.mxu0 0.0
        %2008 = vmatprep.subr.mxu0 0.0
        %2009 = vmatpush2.xpose.msra.mxu0 0.0
        %2010 = vmatprep.subr.mxu0 0.0
        %2011 = vmatpush2.xpose.msra.mxu0 0.0
        %2012 = vmatprep.subr.mxu0 0.0
        %2013 = vmatpush2.xpose.msra.mxu0 0.0
        %2014 = vmatprep.subr.mxu0 0.0
        %2015 = vmatpush2.xpose.msra.mxu0 0.0
        %2016 = vmatprep.subr.mxu0 0.0
        %2017 = vmatpush2.xpose.msra.mxu0 0.0
        %2018 = vmatprep.subr.mxu0 0.0
        %2019 = vmatpush2.xpose.msra.mxu0 0.0
        %2020 = vmatprep.subr.mxu0 0.0
        %2021 = vmatpush2.xpose.msra.mxu0 0.0
        %2022 = vmatprep.subr.mxu0 0.0
        %2023 = vmatpush2.xpose.msra.mxu0 0.0
        %2024 = vmatprep.subr.mxu0 0.0
        %2025 = vmatpush2.xpose.msra.mxu0 0.0
        %2026 = vmatprep.subr.mxu0 0.0
        %2027 = vmatpush2.xpose.msra.mxu0 0.0
        %2028 = vmatprep.subr.mxu0 0.0
        %2029 = vmatpush2.xpose.msra.mxu0 0.0
        %2030 = vmatprep.mubr.f32.mxu0 %v1792
        %2031 = vmatmul.mubr.f32.gmra.mxu0 %v1791
        %v2032 = vpop.f32.mrf.mxu0
        %v2033 = vadd.f32 %v1928, %v2032
        %v2034 = vpop.f32.mrf.mxu0
        %2035 = vmatprep.mubr.f32.mxu0 %v1800
        %2036 = vmatmul.mubr.f32.gmra.mxu0 %v1799
        %v2037 = vpop.f32.mrf.mxu0
        %v2038 = vadd.f32 %v1933, %v2037
        %v2039 = vpop.f32.mrf.mxu0
        %2040 = vmatprep.mubr.f32.mxu0 %v1808
        %2041 = vmatmul.mubr.f32.gmra.mxu0 %v1807
        %v2042 = vpop.f32.mrf.mxu0
        %v2043 = vadd.f32 %v1938, %v2042
        %v2044 = vpop.f32.mrf.mxu0
        %2045 = vmatprep.mubr.f32.mxu0 %v1816
        %2046 = vmatmul.mubr.f32.gmra.mxu0 %v1815
        %v2047 = vpop.f32.mrf.mxu0
        %v2048 = vadd.f32 %v1943, %v2047
        %v2049 = vpop.f32.mrf.mxu0
        %2050 = vmatprep.mubr.f32.mxu0 %v1824
        %2051 = vmatmul.mubr.f32.gmra.mxu0 %v1823
        %v2052 = vpop.f32.mrf.mxu0
        %v2053 = vadd.f32 %v1948, %v2052
        %v2054 = vpop.f32.mrf.mxu0
        %2055 = vmatprep.mubr.f32.mxu0 %v1832
        %2056 = vmatmul.mubr.f32.gmra.mxu0 %v1831
        %v2057 = vpop.f32.mrf.mxu0
        %v2058 = vadd.f32 %v1953, %v2057
        %v2059 = vpop.f32.mrf.mxu0
        %2060 = vmatprep.mubr.f32.mxu0 %v1840
        %2061 = vmatmul.mubr.f32.gmra.mxu0 %v1839
        %v2062 = vpop.f32.mrf.mxu0
        %v2063 = vadd.f32 %v1958, %v2062
        %v2064 = vpop.f32.mrf.mxu0
        %2065 = vmatprep.mubr.f32.mxu0 %v1848
        %2066 = vmatmul.mubr.f32.gmra.mxu0 %v1847
        %v2067 = vpop.f32.mrf.mxu0
        %v2068 = vadd.f32 %v1963, %v2067
        %v2069 = vpop.f32.mrf.mxu0
        %2070 = vdwg.mxu0
        %2071 = vmatprep.subr.mxu0 %v381
        %2072 = vmatpush1.xpose.msra.mxu0 %v380
        %2073 = vmatprep.subr.mxu0 %v373
        %2074 = vmatpush1.xpose.msra.mxu0 %v372
        %2075 = vmatprep.subr.mxu0 %v365
        %2076 = vmatpush1.xpose.msra.mxu0 %v364
        %2077 = vmatprep.subr.mxu0 %v357
        %2078 = vmatpush1.xpose.msra.mxu0 %v356
        %2079 = vmatprep.subr.mxu0 %v349
        %2080 = vmatpush1.xpose.msra.mxu0 %v348
        %2081 = vmatprep.subr.mxu0 %v341
        %2082 = vmatpush1.xpose.msra.mxu0 %v340
        %2083 = vmatprep.subr.mxu0 %v333
        %2084 = vmatpush1.xpose.msra.mxu0 %v332
        %2085 = vmatprep.subr.mxu0 %v325
        %2086 = vmatpush1.xpose.msra.mxu0 %v324
        %2087 = vmatprep.subr.mxu0 %v317
        %2088 = vmatpush1.xpose.msra.mxu0 %v316
        %2089 = vmatprep.subr.mxu0 %v309
        %2090 = vmatpush1.xpose.msra.mxu0 %v308
        %2091 = vmatprep.subr.mxu0 %v301
        %2092 = vmatpush1.xpose.msra.mxu0 %v300
        %2093 = vmatprep.subr.mxu0 %v293
        %2094 = vmatpush1.xpose.msra.mxu0 %v292
        %2095 = vmatprep.subr.mxu0 %v285
        %2096 = vmatpush1.xpose.msra.mxu0 %v284
        %2097 = vmatprep.subr.mxu0 %v277
        %2098 = vmatpush1.xpose.msra.mxu0 %v276
        %2099 = vmatprep.subr.mxu0 %v269
        %2100 = vmatpush1.xpose.msra.mxu0 %v268
        %2101 = vmatprep.subr.mxu0 %v261
        %2102 = vmatpush1.xpose.msra.mxu0 %v260
        %2103 = vmatprep.subr.mxu0 0.0
        %2104 = vmatpush2.xpose.msra.mxu0 0.0
        %2105 = vmatprep.subr.mxu0 0.0
        %2106 = vmatpush2.xpose.msra.mxu0 0.0
        %2107 = vmatprep.subr.mxu0 0.0
        %2108 = vmatpush2.xpose.msra.mxu0 0.0
        %2109 = vmatprep.subr.mxu0 0.0
        %2110 = vmatpush2.xpose.msra.mxu0 0.0
        %2111 = vmatprep.subr.mxu0 0.0
        %2112 = vmatpush2.xpose.msra.mxu0 0.0
        %2113 = vmatprep.subr.mxu0 0.0
        %2114 = vmatpush2.xpose.msra.mxu0 0.0
        %2115 = vmatprep.subr.mxu0 0.0
        %2116 = vmatpush2.xpose.msra.mxu0 0.0
        %2117 = vmatprep.subr.mxu0 0.0
        %2118 = vmatpush2.xpose.msra.mxu0 0.0
        %2119 = vmatprep.subr.mxu0 0.0
        %2120 = vmatpush2.xpose.msra.mxu0 0.0
        %2121 = vmatprep.subr.mxu0 0.0
        %2122 = vmatpush2.xpose.msra.mxu0 0.0
        %2123 = vmatprep.subr.mxu0 0.0
        %2124 = vmatpush2.xpose.msra.mxu0 0.0
        %2125 = vmatprep.subr.mxu0 0.0
        %2126 = vmatpush2.xpose.msra.mxu0 0.0
        %2127 = vmatprep.subr.mxu0 0.0
        %2128 = vmatpush2.xpose.msra.mxu0 0.0
        %2129 = vmatprep.subr.mxu0 0.0
        %2130 = vmatpush2.xpose.msra.mxu0 0.0
        %2131 = vmatprep.subr.mxu0 0.0
        %2132 = vmatpush2.xpose.msra.mxu0 0.0
        %2133 = vmatprep.subr.mxu0 0.0
        %2134 = vmatpush2.xpose.msra.mxu0 0.0
        %2135 = vmatprep.mubr.f32.mxu0 %v1794
        %2136 = vmatmul.mubr.f32.gmra.mxu0 %v1793
        %v2137 = vpop.f32.mrf.mxu0
        %v2138 = vadd.f32 %v2033, %v2137
        %v2139 = vpop.f32.mrf.mxu0
        %2140 = vmatprep.mubr.f32.mxu0 %v1802
        %2141 = vmatmul.mubr.f32.gmra.mxu0 %v1801
        %v2142 = vpop.f32.mrf.mxu0
        %v2143 = vadd.f32 %v2038, %v2142
        %v2144 = vpop.f32.mrf.mxu0
        %2145 = vmatprep.mubr.f32.mxu0 %v1810
        %2146 = vmatmul.mubr.f32.gmra.mxu0 %v1809
        %v2147 = vpop.f32.mrf.mxu0
        %v2148 = vadd.f32 %v2043, %v2147
        %v2149 = vpop.f32.mrf.mxu0
        %2150 = vmatprep.mubr.f32.mxu0 %v1818
        %2151 = vmatmul.mubr.f32.gmra.mxu0 %v1817
        %v2152 = vpop.f32.mrf.mxu0
        %v2153 = vadd.f32 %v2048, %v2152
        %v2154 = vpop.f32.mrf.mxu0
        %2155 = vmatprep.mubr.f32.mxu0 %v1826
        %2156 = vmatmul.mubr.f32.gmra.mxu0 %v1825
        %v2157 = vpop.f32.mrf.mxu0
        %v2158 = vadd.f32 %v2053, %v2157
        %v2159 = vpop.f32.mrf.mxu0
        %2160 = vmatprep.mubr.f32.mxu0 %v1834
        %2161 = vmatmul.mubr.f32.gmra.mxu0 %v1833
        %v2162 = vpop.f32.mrf.mxu0
        %v2163 = vadd.f32 %v2058, %v2162
        %v2164 = vpop.f32.mrf.mxu0
        %2165 = vmatprep.mubr.f32.mxu0 %v1842
        %2166 = vmatmul.mubr.f32.gmra.mxu0 %v1841
        %v2167 = vpop.f32.mrf.mxu0
        %v2168 = vadd.f32 %v2063, %v2167
        %v2169 = vpop.f32.mrf.mxu0
        %2170 = vmatprep.mubr.f32.mxu0 %v1850
        %2171 = vmatmul.mubr.f32.gmra.mxu0 %v1849
        %v2172 = vpop.f32.mrf.mxu0
        %v2173 = vadd.f32 %v2068, %v2172
        %v2174 = vpop.f32.mrf.mxu0
        %2175 = vdwg.mxu0
        %2176 = vmatprep.subr.mxu0 %v383
        %2177 = vmatpush1.xpose.msra.mxu0 %v382
        %2178 = vmatprep.subr.mxu0 %v375
        %2179 = vmatpush1.xpose.msra.mxu0 %v374
        %2180 = vmatprep.subr.mxu0 %v367
        %2181 = vmatpush1.xpose.msra.mxu0 %v366
        %2182 = vmatprep.subr.mxu0 %v359
        %2183 = vmatpush1.xpose.msra.mxu0 %v358
        %2184 = vmatprep.subr.mxu0 %v351
        %2185 = vmatpush1.xpose.msra.mxu0 %v350
        %2186 = vmatprep.subr.mxu0 %v343
        %2187 = vmatpush1.xpose.msra.mxu0 %v342
        %2188 = vmatprep.subr.mxu0 %v335
        %2189 = vmatpush1.xpose.msra.mxu0 %v334
        %2190 = vmatprep.subr.mxu0 %v327
        %2191 = vmatpush1.xpose.msra.mxu0 %v326
        %2192 = vmatprep.subr.mxu0 %v319
        %2193 = vmatpush1.xpose.msra.mxu0 %v318
        %2194 = vmatprep.subr.mxu0 %v311
        %2195 = vmatpush1.xpose.msra.mxu0 %v310
        %2196 = vmatprep.subr.mxu0 %v303
        %2197 = vmatpush1.xpose.msra.mxu0 %v302
        %2198 = vmatprep.subr.mxu0 %v295
        %2199 = vmatpush1.xpose.msra.mxu0 %v294
        %2200 = vmatprep.subr.mxu0 %v287
        %2201 = vmatpush1.xpose.msra.mxu0 %v286
        %2202 = vmatprep.subr.mxu0 %v279
        %2203 = vmatpush1.xpose.msra.mxu0 %v278
        %2204 = vmatprep.subr.mxu0 %v271
        %2205 = vmatpush1.xpose.msra.mxu0 %v270
        %2206 = vmatprep.subr.mxu0 %v263
        %2207 = vmatpush1.xpose.msra.mxu0 %v262
        %2208 = vmatprep.subr.mxu0 0.0
        %2209 = vmatpush2.xpose.msra.mxu0 0.0
        %2210 = vmatprep.subr.mxu0 0.0
        %2211 = vmatpush2.xpose.msra.mxu0 0.0
        %2212 = vmatprep.subr.mxu0 0.0
        %2213 = vmatpush2.xpose.msra.mxu0 0.0
        %2214 = vmatprep.subr.mxu0 0.0
        %2215 = vmatpush2.xpose.msra.mxu0 0.0
        %2216 = vmatprep.subr.mxu0 0.0
        %2217 = vmatpush2.xpose.msra.mxu0 0.0
        %2218 = vmatprep.subr.mxu0 0.0
        %2219 = vmatpush2.xpose.msra.mxu0 0.0
        %2220 = vmatprep.subr.mxu0 0.0
        %2221 = vmatpush2.xpose.msra.mxu0 0.0
        %2222 = vmatprep.subr.mxu0 0.0
        %2223 = vmatpush2.xpose.msra.mxu0 0.0
        %2224 = vmatprep.subr.mxu0 0.0
        %2225 = vmatpush2.xpose.msra.mxu0 0.0
        %2226 = vmatprep.subr.mxu0 0.0
        %2227 = vmatpush2.xpose.msra.mxu0 0.0
        %2228 = vmatprep.subr.mxu0 0.0
        %2229 = vmatpush2.xpose.msra.mxu0 0.0
        %2230 = vmatprep.subr.mxu0 0.0
        %2231 = vmatpush2.xpose.msra.mxu0 0.0
        %2232 = vmatprep.subr.mxu0 0.0
        %2233 = vmatpush2.xpose.msra.mxu0 0.0
        %2234 = vmatprep.subr.mxu0 0.0
        %2235 = vmatpush2.xpose.msra.mxu0 0.0
        %2236 = vmatprep.subr.mxu0 0.0
        %2237 = vmatpush2.xpose.msra.mxu0 0.0
        %2238 = vmatprep.subr.mxu0 0.0
        %2239 = vmatpush2.xpose.msra.mxu0 0.0
        %2240 = vmatprep.mubr.f32.mxu0 %v1796
        %2241 = vmatmul.mubr.f32.gmra.mxu0 %v1795
        %v2242 = vpop.f32.mrf.mxu0
        %v2243 = vadd.f32 %v2138, %v2242
        %v2244 = vpop.f32.mrf.mxu0
        %2245 = vmatprep.mubr.f32.mxu0 %v1804
        %2246 = vmatmul.mubr.f32.gmra.mxu0 %v1803
        %v2247 = vpop.f32.mrf.mxu0
        %v2248 = vadd.f32 %v2143, %v2247
        %v2249 = vpop.f32.mrf.mxu0
        %2250 = vmatprep.mubr.f32.mxu0 %v1812
        %2251 = vmatmul.mubr.f32.gmra.mxu0 %v1811
        %v2252 = vpop.f32.mrf.mxu0
        %v2253 = vadd.f32 %v2148, %v2252
        %v2254 = vpop.f32.mrf.mxu0
        %2255 = vmatprep.mubr.f32.mxu0 %v1820
        %2256 = vmatmul.mubr.f32.gmra.mxu0 %v1819
        %v2257 = vpop.f32.mrf.mxu0
        %v2258 = vadd.f32 %v2153, %v2257
        %v2259 = vpop.f32.mrf.mxu0
        %2260 = vmatprep.mubr.f32.mxu0 %v1828
        %2261 = vmatmul.mubr.f32.gmra.mxu0 %v1827
        %v2262 = vpop.f32.mrf.mxu0
        %v2263 = vadd.f32 %v2158, %v2262
        %v2264 = vpop.f32.mrf.mxu0
        %2265 = vmatprep.mubr.f32.mxu0 %v1836
        %2266 = vmatmul.mubr.f32.gmra.mxu0 %v1835
        %v2267 = vpop.f32.mrf.mxu0
        %v2268 = vadd.f32 %v2163, %v2267
        %v2269 = vpop.f32.mrf.mxu0
        %2270 = vmatprep.mubr.f32.mxu0 %v1844
        %2271 = vmatmul.mubr.f32.gmra.mxu0 %v1843
        %v2272 = vpop.f32.mrf.mxu0
        %v2273 = vadd.f32 %v2168, %v2272
        %v2274 = vpop.f32.mrf.mxu0
        %2275 = vmatprep.mubr.f32.mxu0 %v1852
        %2276 = vmatmul.mubr.f32.gmra.mxu0 %v1851
        %v2277 = vpop.f32.mrf.mxu0
        %v2278 = vadd.f32 %v2173, %v2277
        %v2279 = vpop.f32.mrf.mxu0
        %2280 = vdwg.mxu0
        %v2281 = vadd.f32 %v1853, %v2243
        %v2282 = vadd.f32 %v1854, %v2248
        %v2283 = vadd.f32 %v1855, %v2253
        %v2284 = vadd.f32 %v1856, %v2258
        %v2285 = vadd.f32 %v1857, %v2263
        %v2286 = vadd.f32 %v1858, %v2268
        %v2287 = vadd.f32 %v1859, %v2273
        %v2288 = vadd.f32 %v1860, %v2278
        %2289 = vst [vmem:[#allocation2] sm:$0xff] %v2281
        %2290 = vst [vmem:[#allocation2 + $0x8] sm:$0xff] %v2282
        %2291 = vst [vmem:[#allocation2 + $0x10] sm:$0xff] %v2283
        %2292 = vst [vmem:[#allocation2 + $0x18] sm:$0xff] %v2284
        %2293 = vst [vmem:[#allocation2 + $0x20] sm:$0xff] %v2285
        %2294 = vst [vmem:[#allocation2 + $0x28] sm:$0xff] %v2286
        %2295 = vst [vmem:[#allocation2 + $0x30] sm:$0xff] %v2287
        %2296 = vst [vmem:[#allocation2 + $0x38] sm:$0xff] %v2288
        %p2297 = scmp.eq.s32.totalorder %s26, 1
        // Predicated region
        $region49: #{tpu_custom_call.1} parent=31 // pred_check
          %p2298 = pneg %p2297
        $region50: #{tpu_custom_call.1} parent=31 // pred_check_branch
          %2300 = sbr.rel (%p2298) target = $region52
        $region51: #{tpu_custom_call.1} parent=31 // pred_region
          %v2301 = vld [vmem:[#allocation9] sm:$0xff]
          %v2302 = vld [vmem:[#allocation9 + $0x8] sm:$0xff]
          %v2303 = vld [vmem:[#allocation9 + $0x10] sm:$0xff]
          %v2304 = vld [vmem:[#allocation9 + $0x18] sm:$0xff]
          %v2305 = vld [vmem:[#allocation9 + $0x20] sm:$0xff]
          %v2306 = vld [vmem:[#allocation9 + $0x28] sm:$0xff]
          %v2307 = vld [vmem:[#allocation9 + $0x30] sm:$0xff]
          %v2308 = vld [vmem:[#allocation9 + $0x38] sm:$0xff]
          %v2309 = vld [vmem:[#allocation2] sm:$0xff]
          %v2310 = vld [vmem:[#allocation2 + $0x8] sm:$0xff]
          %v2311 = vld [vmem:[#allocation2 + $0x10] sm:$0xff]
          %v2312 = vld [vmem:[#allocation2 + $0x18] sm:$0xff]
          %v2313 = vld [vmem:[#allocation2 + $0x20] sm:$0xff]
          %v2314 = vld [vmem:[#allocation2 + $0x28] sm:$0xff]
          %v2315 = vld [vmem:[#allocation2 + $0x30] sm:$0xff]
          %v2316 = vld [vmem:[#allocation2 + $0x38] sm:$0xff]
          %v2317 = vld [vmem:[#allocation3] sm:$0xff]
          %v2318 = vld [vmem:[#allocation3 + $0x8] sm:$0xff]
          %v2319 = vld [vmem:[#allocation3 + $0x10] sm:$0xff]
          %v2320 = vld [vmem:[#allocation3 + $0x18] sm:$0xff]
          %v2321 = vld [vmem:[#allocation3 + $0x20] sm:$0xff]
          %v2322 = vld [vmem:[#allocation3 + $0x28] sm:$0xff]
          %v2323 = vld [vmem:[#allocation3 + $0x30] sm:$0xff]
          %v2324 = vld [vmem:[#allocation3 + $0x38] sm:$0xff]
          %2326 = vset.pattern.permute.xlu0 0
          %2327 = vperm.xlu0 %2326, %v2317
          %v2328 = vpop.permute.xlu0 %2327
          %2331 = vset.pattern.permute.xlu0 0
          %2332 = vperm.xlu0 %2331, %v2318
          %v2333 = vpop.permute.xlu0 %2332
          %2336 = vset.pattern.permute.xlu0 0
          %2337 = vperm.xlu0 %2336, %v2319
          %v2338 = vpop.permute.xlu0 %2337
          %2341 = vset.pattern.permute.xlu0 0
          %2342 = vperm.xlu0 %2341, %v2320
          %v2343 = vpop.permute.xlu0 %2342
          %2346 = vset.pattern.permute.xlu0 0
          %2347 = vperm.xlu0 %2346, %v2321
          %v2348 = vpop.permute.xlu0 %2347
          %2351 = vset.pattern.permute.xlu0 0
          %2352 = vperm.xlu0 %2351, %v2322
          %v2353 = vpop.permute.xlu0 %2352
          %2356 = vset.pattern.permute.xlu0 0
          %2357 = vperm.xlu0 %2356, %v2323
          %v2358 = vpop.permute.xlu0 %2357
          %2361 = vset.pattern.permute.xlu0 0
          %2362 = vperm.xlu0 %2361, %v2324
          %v2363 = vpop.permute.xlu0 %2362
          %v2365 = vmul.f32 %v2328, %v2301
          %v2366 = vmul.f32 %v2333, %v2302
          %v2367 = vmul.f32 %v2338, %v2303
          %v2368 = vmul.f32 %v2343, %v2304
          %v2369 = vmul.f32 %v2348, %v2305
          %v2370 = vmul.f32 %v2353, %v2306
          %v2371 = vmul.f32 %v2358, %v2307
          %v2372 = vmul.f32 %v2363, %v2308
          %v2373 = vsub.f32 %v2309, %v2365
          %v2374 = vsub.f32 %v2310, %v2366
          %v2375 = vsub.f32 %v2311, %v2367
          %v2376 = vsub.f32 %v2312, %v2368
          %v2377 = vsub.f32 %v2313, %v2369
          %v2378 = vsub.f32 %v2314, %v2370
          %v2379 = vsub.f32 %v2315, %v2371
          %v2380 = vsub.f32 %v2316, %v2372
          %v2381 = vmul.f32 %v2373, %v2373
          %v2382 = vmul.f32 %v2374, %v2374
          %v2383 = vmul.f32 %v2375, %v2375
          %v2384 = vmul.f32 %v2376, %v2376
          %v2385 = vmul.f32 %v2377, %v2377
          %v2386 = vmul.f32 %v2378, %v2378
          %v2387 = vmul.f32 %v2379, %v2379
          %v2388 = vmul.f32 %v2380, %v2380
          %2389 = vadd.xlane.f32.xlu0 %v2381
          %v2390 = vpop.xlane.xlu0 %2389
          %2391 = vadd.xlane.f32.xlu0 %v2382
          %v2392 = vpop.xlane.xlu0 %2391
          %2393 = vadd.xlane.f32.xlu0 %v2383
          %v2394 = vpop.xlane.xlu0 %2393
          %2395 = vadd.xlane.f32.xlu0 %v2384
          %v2396 = vpop.xlane.xlu0 %2395
          %2397 = vadd.xlane.f32.xlu0 %v2385
          %v2398 = vpop.xlane.xlu0 %2397
          %2399 = vadd.xlane.f32.xlu0 %v2386
          %v2400 = vpop.xlane.xlu0 %2399
          %2401 = vadd.xlane.f32.xlu0 %v2387
          %v2402 = vpop.xlane.xlu0 %2401
          %2403 = vadd.xlane.f32.xlu0 %v2388
          %v2404 = vpop.xlane.xlu0 %2403
          %v2405 = vmax.f32 %v2390, 1e-24
          %v2406 = vmax.f32 %v2392, 1e-24
          %v2407 = vmax.f32 %v2394, 1e-24
          %v2408 = vmax.f32 %v2396, 1e-24
          %v2409 = vmax.f32 %v2398, 1e-24
          %v2410 = vmax.f32 %v2400, 1e-24
          %v2411 = vmax.f32 %v2402, 1e-24
          %v2412 = vmax.f32 %v2404, 1e-24
          %v2413 = vrsqrt.pop %v2405
          %v2414 = vrsqrt.pop %v2406
          %v2415 = vrsqrt.pop %v2407
          %v2416 = vrsqrt.pop %v2408
          %v2417 = vrsqrt.pop %v2409
          %v2418 = vrsqrt.pop %v2410
          %v2419 = vrsqrt.pop %v2411
          %v2420 = vrsqrt.pop %v2412
          %v2421 = vmul.f32 %v2373, %v2413
          %v2422 = vmul.f32 %v2374, %v2414
          %v2423 = vmul.f32 %v2375, %v2415
          %v2424 = vmul.f32 %v2376, %v2416
          %v2425 = vmul.f32 %v2377, %v2417
          %v2426 = vmul.f32 %v2378, %v2418
          %v2427 = vmul.f32 %v2379, %v2419
          %v2428 = vmul.f32 %v2380, %v2420
          %v2429 = vmul.f32 %v2421, %v2421
          %v2430 = vmul.f32 %v2422, %v2422
          %v2431 = vmul.f32 %v2423, %v2423
          %v2432 = vmul.f32 %v2424, %v2424
          %v2433 = vmul.f32 %v2425, %v2425
          %v2434 = vmul.f32 %v2426, %v2426
          %v2435 = vmul.f32 %v2427, %v2427
          %v2436 = vmul.f32 %v2428, %v2428
          %v2437 = vadd.f32 %v2429, %v2430
          %v2438 = vadd.f32 %v2437, %v2431
          %v2439 = vadd.f32 %v2438, %v2432
          %v2440 = vadd.f32 %v2439, %v2433
          %v2441 = vadd.f32 %v2440, %v2434
          %v2442 = vadd.f32 %v2441, %v2435
          %v2443 = vadd.f32 %v2442, %v2436
          %2444 = vadd.xlane.f32.xlu0 %v2443
          %v2445 = vpop.xlane.xlu0 %2444
          %v2446 = vrot.slane %v2445, 4
          %v2447 = vadd.f32 %v2445, %v2446
          %v2448 = vrot.slane %v2447, 2
          %v2449 = vadd.f32 %v2447, %v2448
          %v2450 = vrot.slane %v2449, 1
          %v2451 = vadd.f32 %v2449, %v2450
          %s2452 = vtos %v2451
          %s2453 = smax.f32 %s2452, 1e-24
          %v2454 = vstv %s2453
          %v2455 = vrsqrt.pop %v2454
          %s2456 = vtos %v2455
          %v2457 = vstv %s2456
          %v2458 = vmul.f32 %v2421, %v2457
          %v2459 = vmul.f32 %v2422, %v2457
          %v2460 = vmul.f32 %v2423, %v2457
          %v2461 = vmul.f32 %v2424, %v2457
          %v2462 = vmul.f32 %v2425, %v2457
          %v2463 = vmul.f32 %v2426, %v2457
          %v2464 = vmul.f32 %v2427, %v2457
          %v2465 = vmul.f32 %v2428, %v2457
          %2466 = vst [vmem:[%s233] sm:$0xff] %v2458
          %2467 = vst [vmem:[%s233 + $0x8] sm:$0xff] %v2459
          %2468 = vst [vmem:[%s233 + $0x10] sm:$0xff] %v2460
          %2469 = vst [vmem:[%s233 + $0x18] sm:$0xff] %v2461
          %2470 = vst [vmem:[%s233 + $0x20] sm:$0xff] %v2462
          %2471 = vst [vmem:[%s233 + $0x28] sm:$0xff] %v2463
          %2472 = vst [vmem:[%s233 + $0x30] sm:$0xff] %v2464
          %2473 = vst [vmem:[%s233 + $0x38] sm:$0xff] %v2465
        $region52: #{tpu_custom_call.1} parent=31 // pred_fallthru
          _
        %s2474 = sand.u32 %s111, 1
        %s2475 = scalar_lea.sflag [#allocation6], %s2474
        %s2476 = sand.u32 %s111, 1
        %s2477 = smul.addr %s2476, 64
        %s2478 = scalar_lea.vmem [#allocation10], %s2477
        // Predicated region
        $region53: #{tpu_custom_call.1} parent=31 // pred_check
          %p2479 = pneg %p121
        $region54: #{tpu_custom_call.1} parent=31 // pred_check_branch
          %2481 = sbr.rel (%p2479) target = $region56
        $region55: #{tpu_custom_call.1} parent=31 // pred_region
          %s2483 = ssub.s32 1024, 1024
          %2484 = vsyncadd %s2475, %s2483
          %s2485 = smul.addr %s25, 8
          %s2486 = smul.addr %s2485, 128
          %s2487 = scalar_lea.hbm %s3, %s2486
          %s2488 = sshll.u32 %s2478, 4
          %s2489 = int_to_ptr.vmem [resolvable:$true] %s2488
          %2494 = dma.vmem_to_hbm [thread:$0]  %s2489, 1024, %s2487, %s2475, 128, 128, 8
        $region56: #{tpu_custom_call.1} parent=31 // pred_fallthru
          _
      $region32: #{tpu_custom_call.1} parent=5 // pred_fallthru
        _
      %p2495 = scmp.le.s32.totalorder 2, %s16
      // Predicated region
      $region57: #{tpu_custom_call.1} parent=5 // pred_check
        %p2496 = pneg %p2495
      $region58: #{tpu_custom_call.1} parent=5 // pred_check_branch
        %2498 = sbr.rel (%p2496) target = $region60
      $region59: #{tpu_custom_call.1} parent=5 // pred_region
        %s2499 = ssub.s32 %s16, 2
        // Predicated region
        $region61: #{tpu_custom_call.1} parent=59 // pred_check
          %p2500 = pneg %p127
        $region62: #{tpu_custom_call.1} parent=59 // pred_check_branch
          %2502 = sbr.rel (%p2500) target = $region64
        $region63: #{tpu_custom_call.1} parent=59 // pred_region
          %s2503 = sand.u32 %s112, 1
          %s2504 = scalar_lea.sflag [#allocation6], %s2503
          %s2505 = sand.u32 %s112, 1
          %s2506 = smul.addr %s2505, 64
          %s2507 = scalar_lea.vmem [#allocation10], %s2506
          %2508 = dma.done %s2504, 1024
        $region64: #{tpu_custom_call.1} parent=59 // pred_fallthru
          _
      $region60: #{tpu_custom_call.1} parent=5 // pred_fallthru
        _
    $region6: #{tpu_custom_call.1} parent=1 // loop_footer
      %s20 = sadd.s32 1, %s16
    $region7: #{tpu_custom_call.1} parent=1 // loop_footer_branch
      %15 = sbr.rel target = $region3
    $region8: #{tpu_custom_call.1} parent=1 // loop_exit
      _
    %2509 = vsyncpa [#allocation5], 1
    %s2510 = scalar_lea.sflag [#allocation5], 1
    %2511 = vsyncpa %s2510, 1
    %2512 = vsyncpa [#allocation8], 1
    %2513 = vsyncpa [#allocation6], 1
    %s2514 = scalar_lea.sflag [#allocation6], 1
    %2515 = vsyncpa %s2514, 1

</llo_original>
